<compile_context>
chip_gen: v5e
topology: v5e:2x2
jax: 0.10.0
libtpu: 0.0.40
codegen_flags: <defaults>
</compile_context>

<pallas_src>
import functools

import numpy as np
import jax
import jax.numpy as jnp
from jax import lax
from jax.experimental import pallas as pl
from jax.experimental.pallas import tpu as pltpu


def _round_up(x, m):
    return (x + m - 1) // m * m


# --------------------------------------------------------------------------- #
# Pallas kernel 1: fused matmul + bias + optional ReLU (K, N VMEM-resident)    #
# --------------------------------------------------------------------------- #
def _matmul_bias_act_kernel(x_ref, w_ref, b_ref, o_ref, *, apply_relu):
    acc = jnp.dot(x_ref[...], w_ref[...], preferred_element_type=jnp.float32)
    acc = acc + b_ref[...]
    if apply_relu:
        acc = jnp.maximum(acc, 0.0)
    o_ref[...] = acc.astype(o_ref.dtype)


def fused_matmul_bias_act(x, w, b, *, apply_relu, tm=512, out_dtype=None):
    """out = act(x @ w + b); x:(M,K), w:(K,N), b:(N,) -> (M,N).

    K and N are small here (taps*Cin and Cout*scale^3), so both stay un-tiled
    and VMEM-resident with constant index maps; the grid is 1-D over M.  No M
    padding: grid = cdiv(M, tm) and Pallas masks the ragged final block.
    """
    M, K = x.shape
    K2, N = w.shape
    assert K == K2 and b.shape == (N,)
    out_dtype = out_dtype or x.dtype
    tm = max(8, min(tm, _round_up(M, 8)))

    xb = x.astype(jnp.bfloat16)
    wb = w.astype(jnp.bfloat16)
    b2 = b.astype(jnp.float32).reshape(1, N)

    cost = pl.CostEstimate(
        flops=2 * M * K * N,
        transcendentals=0,
        bytes_accessed=M * K * 2 + K * N * 2 + N * 4
        + M * N * jnp.dtype(out_dtype).itemsize)

    return pl.pallas_call(
        functools.partial(_matmul_bias_act_kernel, apply_relu=apply_relu),
        out_shape=jax.ShapeDtypeStruct((M, N), out_dtype),
        grid_spec=pltpu.PrefetchScalarGridSpec(
            num_scalar_prefetch=0,
            grid=(pl.cdiv(M, tm),),
            in_specs=[
                pl.BlockSpec((tm, K), lambda i: (i, 0)),
                pl.BlockSpec((K, N), lambda i: (0, 0)),   # resident weights
                pl.BlockSpec((1, N), lambda i: (0, 0)),   # resident bias
            ],
            out_specs=pl.BlockSpec((tm, N), lambda i: (i, 0)),
        ),
        compiler_params=pltpu.CompilerParams(
            dimension_semantics=("parallel",),
            vmem_limit_bytes=32 * 1024 * 1024),
        cost_estimate=cost,
    )(xb, wb, b2)


# --------------------------------------------------------------------------- #
# Pallas kernel 2: direct stride-1 valid 3D conv (no materialized im2col)      #
# --------------------------------------------------------------------------- #
def _direct_conv3d_kernel(x_ref, w_ref, b_ref, o_ref, acc_ref, *,
                          taps, row_stride, pout, apply_relu):
    dz = pl.program_id(2)

    @pl.when(dz == 0)
    def _():
        acc_ref[...] = jnp.zeros_like(acc_ref)

    plane = x_ref[0, 0]                       # (H*W, Cin) bf16, VMEM-resident
    acc = acc_ref[...]
    for t, (dy, dx) in enumerate(taps):       # static unroll over in-plane taps
        s = dy * row_stride + dx              # flattened (H,W) row shift
        acc = acc + jnp.dot(plane[s:s + pout, :], w_ref[0, t],
                            preferred_element_type=jnp.float32)
    acc_ref[...] = acc

    @pl.when(dz == pl.num_programs(2) - 1)
    def _():
        out = acc_ref[...] + b_ref[...]
        if apply_relu:
            out = jnp.maximum(out, 0.0)
        o_ref[0, 0] = out.astype(o_ref.dtype)


def conv3d_pallas(x_ndhwc, w_oidhw, b, *, apply_relu=True):
    """Valid (padding=0), stride-1 3D conv + bias + optional ReLU (ConvPass)."""
    N, D, H, W, Cin = x_ndhwc.shape
    Cout, Cin2, kd, kh, kw = w_oidhw.shape
    assert Cin == Cin2
    Do, Ho, Wo = D - kd + 1, H - kh + 1, W - kw + 1
    P = H * W
    # With Pout rows per plane, the largest tap access hits exactly row P-1,
    # so no padding of the input plane is needed.  Rows q = ho*W + wo with
    # wo >= Wo are wrap-around garbage and get cropped after the kernel.
    Pout = (Ho - 1) * W + Wo
    taps = tuple((dy, dx) for dy in range(kh) for dx in range(kw))

    xf = x_ndhwc.reshape(N, D, P, Cin).astype(jnp.bfloat16)       # free reshape
    wf = jnp.transpose(w_oidhw, (2, 3, 4, 1, 0)).reshape(kd, kh * kw, Cin, Cout)
    wf = wf.astype(jnp.bfloat16)
    bf = b.astype(jnp.float32).reshape(1, Cout)

    cost = pl.CostEstimate(
        flops=2 * N * Do * Pout * kd * kh * kw * Cin * Cout,
        transcendentals=0,
        bytes_accessed=N * D * P * Cin * 2 * kd
        + kd * kh * kw * Cin * Cout * 2
        + N * Do * Pout * Cout * jnp.dtype(x_ndhwc.dtype).itemsize)

    out = pl.pallas_call(
        functools.partial(_direct_conv3d_kernel, taps=taps, row_stride=W,
                          pout=Pout, apply_relu=apply_relu),
        out_shape=jax.ShapeDtypeStruct((N, Do, Pout, Cout), x_ndhwc.dtype),
        grid_spec=pltpu.PrefetchScalarGridSpec(
            num_scalar_prefetch=0,
            grid=(N, Do, kd),
            in_specs=[
                # z-tap shift expressed directly in the index map (block = 1 plane)
                pl.BlockSpec((1, 1, P, Cin), lambda n, d, z: (n, d + z, 0, 0)),
                pl.BlockSpec((1, kh * kw, Cin, Cout), lambda n, d, z: (z, 0, 0, 0)),
                pl.BlockSpec((1, Cout), lambda n, d, z: (0, 0)),
            ],
            out_specs=pl.BlockSpec((1, 1, Pout, Cout), lambda n, d, z: (n, d, 0, 0)),
            scratch_shapes=[pltpu.VMEM((Pout, Cout), jnp.float32)],
        ),
        compiler_params=pltpu.CompilerParams(
            dimension_semantics=("parallel", "parallel", "arbitrary"),
            vmem_limit_bytes=32 * 1024 * 1024),
        cost_estimate=cost,
    )(xf, wf, bf)

    # Crop per-plane flat rows (q = ho*W + wo) back to (Ho, Wo); one fused copy.
    out = jnp.pad(out, ((0, 0), (0, 0), (0, Ho * W - Pout), (0, 0)))
    out = out.reshape(N, Do, Ho, W, Cout)[:, :, :, :Wo, :]
    return out


# --------------------------------------------------------------------------- #
# Strided conv (downsample) and transposed conv (upsample) on the matmul core  #
# --------------------------------------------------------------------------- #
def _im2col_3d(x_ndhwc, kernel_size, stride):
    """Generic valid-conv patch extraction (fallback only, stride != kernel)."""
    N, D, H, W, C = x_ndhwc.shape
    kd, kh, kw = kernel_size
    sd, sh, sw = stride
    Do = (D - kd) // sd + 1
    Ho = (H - kh) // sh + 1
    Wo = (W - kw) // sw + 1
    cols = []
    for dz in range(kd):
        for dy in range(kh):
            for dx in range(kw):
                sl = x_ndhwc[:, dz:dz + (Do - 1) * sd + 1:sd,
                                dy:dy + (Ho - 1) * sh + 1:sh,
                                dx:dx + (Wo - 1) * sw + 1:sw, :]
                cols.append(sl)
    patches = jnp.concatenate(cols, axis=-1)
    return patches.reshape(N * Do * Ho * Wo, kd * kh * kw * C), (N, Do, Ho, Wo)


def conv3d_strided_pallas(x_ndhwc, w_oidhw, b, stride, *, apply_relu=True):
    """Valid strided 3D conv + bias + ReLU (ConvDownsample)."""
    N, D, H, W, C = x_ndhwc.shape
    Cout = w_oidhw.shape[0]
    kd, kh, kw = (int(k) for k in w_oidhw.shape[2:])
    sd, sh, sw = stride
    Do = (D - kd) // sd + 1
    Ho = (H - kh) // sh + 1
    Wo = (W - kw) // sw + 1
    if (kd, kh, kw) == (sd, sh, sw):
        # Non-overlapping windows: space-to-depth is a pure reshape/transpose.
        xc = x_ndhwc[:, :Do * kd, :Ho * kh, :Wo * kw, :]
        patches = xc.reshape(N, Do, kd, Ho, kh, Wo, kw, C)
        patches = patches.transpose(0, 1, 3, 5, 2, 4, 6, 7)
        patches = patches.reshape(N * Do * Ho * Wo, kd * kh * kw * C)
    else:
        patches, _ = _im2col_3d(x_ndhwc, (kd, kh, kw), stride)
    w2 = jnp.transpose(w_oidhw, (2, 3, 4, 1, 0)).reshape(-1, Cout)
    out = fused_matmul_bias_act(patches, w2, b, apply_relu=apply_relu,
                                out_dtype=x_ndhwc.dtype)
    return out.reshape(N, Do, Ho, Wo, Cout)


def conv_transpose3d_pallas(x_ndhwc, w_iodhw, b, stride):
    """PyTorch ConvTranspose3d with kernel_size == stride (non-overlapping)."""
    N, D, H, W, Cin = x_ndhwc.shape
    Cin2, Cout, sd, sh, sw = w_iodhw.shape
    assert Cin == Cin2 and (sd, sh, sw) == tuple(stride)
    x2 = x_ndhwc.reshape(N * D * H * W, Cin)
    # Column order (sd, sh, sw, Cout): the depth-to-space shuffle then keeps a
    # (sw*Cout)-wide contiguous trailing block instead of only Cout-wide.
    w2 = jnp.transpose(w_iodhw, (0, 2, 3, 4, 1)).reshape(Cin, sd * sh * sw * Cout)
    b2 = jnp.tile(b, sd * sh * sw)
    out = fused_matmul_bias_act(x2, w2, b2, apply_relu=False,
                                out_dtype=x_ndhwc.dtype)
    out = out.reshape(N, D, H, W, sd, sh, sw, Cout)
    out = jnp.transpose(out, (0, 1, 4, 2, 5, 3, 6, 7))
    return out.reshape(N, D * sd, H * sh, W * sw, Cout)


# --------------------------------------------------------------------------- #
# ConvResampleNode equivalent                                                  #
# --------------------------------------------------------------------------- #
def _init_conv_params(key, cin, cout, ksize):
    fan_in = cin * int(np.prod(ksize))
    bound = 1.0 / np.sqrt(fan_in)
    kw_, kb_ = jax.random.split(key)
    w = jax.random.uniform(kw_, (cout, cin) + tuple(ksize), jnp.float32, -bound, bound)
    b = jax.random.uniform(kb_, (cout,), jnp.float32, -bound, bound)
    return w, b


def _init_convtrans_params(key, cin, cout, ksize):
    fan_in = cout * int(np.prod(ksize))
    bound = 1.0 / np.sqrt(fan_in)
    kw_, kb_ = jax.random.split(key)
    w = jax.random.uniform(kw_, (cin, cout) + tuple(ksize), jnp.float32, -bound, bound)
    b = jax.random.uniform(kb_, (cout,), jnp.float32, -bound, bound)
    return w, b


class ConvResampleNode:
    """JAX/Pallas port of leibnetz ConvResampleNode (3D, valid padding, ReLU)."""

    def __init__(self, input_keys, output_keys, scale_factor=(1, 1, 1),
                 kernel_sizes=None, input_nc=1, output_nc=1, identifier=None,
                 key=None):
        # TODO(synk): base Node bookkeeping (crop factors, graph wiring,
        # compute_minimal_shapes / shape queries) is not ported -- forward only.
        self.input_keys = list(input_keys)
        self.output_keys = list(output_keys)
        self.kernel_sizes = kernel_sizes
        self.input_nc = input_nc
        self.output_nc = output_nc
        self.scale_factor = np.array(scale_factor)
        self.identifier = identifier
        key = key if key is not None else jax.random.PRNGKey(0)

        if np.all(self.scale_factor == 1):
            self._type = "conv_pass"
            self.color = "#00FF00"
            self.layers = []
            cin = input_nc
            for ks in kernel_sizes:
                key, sub = jax.random.split(key)
                self.layers.append(_init_conv_params(sub, cin, output_nc, ks))
                cin = output_nc
        elif np.all(self.scale_factor <= 1):
            self._type = "conv_downsample"
            self.color = "#00FFFF"
            # NOTE: truncation matches the PyTorch module's (1/scale).astype(int).
            self.downsample_factor = tuple(int(v) for v in (1 / self.scale_factor))
            key, sub = jax.random.split(key)
            self.layers = [_init_conv_params(sub, input_nc, output_nc, kernel_sizes)]
        elif np.all(self.scale_factor >= 1):
            self._type = "conv_upsample"
            self.color = "#FFFF00"
            self.up_factor = tuple(int(v) for v in self.scale_factor)
            key, sub = jax.random.split(key)
            self.layers = [_init_convtrans_params(sub, input_nc, output_nc,
                                                  self.up_factor)]
        else:
            raise NotImplementedError(
                "Simultaneous up- and downsampling not implemented")

        self._fwd = jax.jit(self._forward_impl)

    def _forward_impl(self, x_ncdhw, layers):
        x = jnp.transpose(x_ncdhw, (0, 2, 3, 4, 1))        # NCDHW -> NDHWC
        if self._type == "conv_pass":
            for w, b in layers:
                x = conv3d_pallas(x, w, b, apply_relu=True)
        elif self._type == "conv_downsample":
            w, b = layers[0]
            x = conv3d_strided_pallas(x, w, b, self.downsample_factor,
                                      apply_relu=True)
        else:  # conv_upsample
            w, b = layers[0]
            x = conv_transpose3d_pallas(x, w, b, self.up_factor)
        return jnp.transpose(x, (0, 4, 1, 2, 3))           # NDHWC -> NCDHW

    def forward(self, inputs):
        x = inputs[self.input_keys[0]]                     # NCDHW, like PyTorch
        out = self._fwd(x, self.layers)
        return {self.output_keys[0]: out}


# --------------------------------------------------------------------------- #
# Pure-JAX references for verification                                         #
# --------------------------------------------------------------------------- #
def _ref_conv(x_ncdhw, w, b, stride, relu):
    y = lax.conv_general_dilated(
        x_ncdhw, w, window_strides=stride, padding="VALID",
        dimension_numbers=("NCDHW", "OIDHW", "NCDHW"))
    y = y + b[None, :, None, None, None]
    return jnp.maximum(y, 0.0) if relu else y


def _ref_conv_transpose(x_ncdhw, w_iodhw, b):
    # kernel == stride, non-overlapping transposed conv
    N, Cin, D, H, W = x_ncdhw.shape
    _, Cout, sd, sh, sw = w_iodhw.shape
    t = jnp.einsum("nczyx,codef->nozdyexf", x_ncdhw, w_iodhw)
    t = t.reshape(N, Cout, D * sd, H * sh, W * sw)
    return t + b[None, :, None, None, None]


# --------------------------------------------------------------------------- #
if __name__ == "__main__":
    root = jax.random.PRNGKey(0)
    kx, kp, kd, ku = jax.random.split(root, 4)

    # Small example input: batch=2, input_nc=4, spatial=8^3 (NCDHW)
    x = jax.random.normal(kx, (2, 4, 8, 8, 8), jnp.float32)

    # scale == 1 -> conv_pass (two valid 3x3x3 convs + ReLU)
    node_pass = ConvResampleNode(["in"], ["out"], scale_factor=(1, 1, 1),
                                 kernel_sizes=[(3, 3, 3), (3, 3, 3)],
                                 input_nc=4, output_nc=8, key=kp)
    # scale <= 1 -> conv_downsample (stride-2 valid 2x2x2 conv + ReLU)
    node_down = ConvResampleNode(["in"], ["out"], scale_factor=(0.5, 0.5, 0.5),
                                 kernel_sizes=(2, 2, 2),
                                 input_nc=4, output_nc=8, key=kd)
    # scale >= 1 -> conv_upsample (transposed conv, kernel=stride=2)
    node_up = ConvResampleNode(["in"], ["out"], scale_factor=(2, 2, 2),
                               kernel_sizes=None,
                               input_nc=4, output_nc=8, key=ku)

    # bf16 MXU operands (f32 accumulate / epilogue) -> compare at 2e-2.
    TOL = dict(rtol=2e-2, atol=2e-2)

    # conv_pass
    out_pass = node_pass.forward({"in": x})["out"]
    jax.block_until_ready(out_pass)
    ref = x
    for w, b in node_pass.layers:
        ref = _ref_conv(ref, w, b, (1, 1, 1), relu=True)
    assert out_pass.shape == (2, 8, 4, 4, 4), out_pass.shape
    assert jnp.allclose(out_pass, ref, **TOL)

    # conv_downsample
    out_down = node_down.forward({"in": x})["out"]
    jax.block_until_ready(out_down)
    w, b = node_down.layers[0]
    ref = _ref_conv(x, w, b, (2, 2, 2), relu=True)
    assert out_down.shape == (2, 8, 4, 4, 4), out_down.shape
    assert jnp.allclose(out_down, ref, **TOL)

    # conv_upsample
    out_up = node_up.forward({"in": x})["out"]
    jax.block_until_ready(out_up)
    w, b = node_up.layers[0]
    ref = _ref_conv_transpose(x, w, b)
    assert out_up.shape == (2, 8, 16, 16, 16), out_up.shape
    assert jnp.allclose(out_up, ref, **TOL)

    print("KERNEL_OK")
</pallas_src>

<mosaic_0001>
module attributes {stable_mosaic.version = 11 : i64} {
  func.func @_direct_conv3d_kernel(%arg0: i32, %arg1: i32, %arg2: i32, %arg3: memref<1x1x64x4xbf16, #tpu.memory_space<vmem>>, %arg4: memref<1x9x4x8xbf16, #tpu.memory_space<vmem>>, %arg5: memref<1x8xf32, #tpu.memory_space<vmem>>, %arg6: memref<1x1x46x8xf32, #tpu.memory_space<vmem>>, %arg7: memref<46x8xf32, #tpu.memory_space<vmem>>) attributes {dimension_semantics = [#tpu.dimension_semantics<parallel>, #tpu.dimension_semantics<parallel>, #tpu.dimension_semantics<arbitrary>], iteration_bounds = array<i64: 2, 6, 3>, scalar_prefetch = 0 : i64, scratch_operands = 1 : i64, tpu.core_type = #tpu.core_type<tc>, window_params = [{transform_indices = @transform_0, window_bounds = array<i64: 1, 1, 64, 4>}, {transform_indices = @transform_1, window_bounds = array<i64: 1, 9, 4, 8>}, {pipeline_mode = #tpu.pipeline_mode<synchronous>, transform_indices = @transform_2, window_bounds = array<i64: 1, 8>}, {transform_indices = @transform_3, window_bounds = array<i64: 1, 1, 46, 8>}]} {
    %c0_i32 = arith.constant 0 : i32
    %0 = arith.cmpi eq, %arg2, %c0_i32 : i32
    %1 = arith.extui %0 : i1 to i32
    %c0_i32_0 = arith.constant 0 : i32
    %2 = arith.cmpi ne, %1, %c0_i32_0 : i32
    scf.if %2 {
      %cst_45 = arith.constant 0.000000e+00 : f32
      %55 = vector.broadcast %cst_45 : f32 to vector<46x8xf32>
      %c0_46 = arith.constant 0 : index
      %c0_47 = arith.constant 0 : index
      %56 = vector.load %arg7[%c0_46, %c0_47] : memref<46x8xf32, #tpu.memory_space<vmem>>, vector<46x8xf32>
      tpu.vector_store %arg7[%c0_46, %c0_47], %55 {strides = array<i32>} : memref<46x8xf32, #tpu.memory_space<vmem>>, vector<46x8xf32>,
    } else {
    }
    %c0 = arith.constant 0 : index
    %c0_1 = arith.constant 0 : index
    %c0_2 = arith.constant 0 : index
    %c0_3 = arith.constant 0 : index
    %3 = vector.load %arg3[%c0, %c0_1, %c0_2, %c0_3] : memref<1x1x64x4xbf16, #tpu.memory_space<vmem>>, vector<1x1x64x4xbf16>
    %4 = vector.shape_cast %3 : vector<1x1x64x4xbf16> to vector<64x4xbf16>
    %c0_4 = arith.constant 0 : index
    %c0_5 = arith.constant 0 : index
    %5 = vector.load %arg7[%c0_4, %c0_5] : memref<46x8xf32, #tpu.memory_space<vmem>>, vector<46x8xf32>
    %6 = vector.extract_strided_slice %4 {offsets = [0, 0], sizes = [46, 4], strides = [1, 1]} : vector<64x4xbf16> to vector<46x4xbf16>
    %c0_6 = arith.constant 0 : index
    %c0_7 = arith.constant 0 : index
    %c0_8 = arith.constant 0 : index
    %c0_9 = arith.constant 0 : index
    %7 = vector.load %arg4[%c0_6, %c0_7, %c0_8, %c0_9] : memref<1x9x4x8xbf16, #tpu.memory_space<vmem>>, vector<1x1x4x8xbf16>
    %8 = vector.shape_cast %7 : vector<1x1x4x8xbf16> to vector<4x8xbf16>
    %cst = arith.constant dense<0.000000e+00> : vector<46x8xf32>
    %9 = tpu.matmul %6, %8, %cst {dimension_numbers = #tpu.dot_dimension_numbers<[1], [0], [0], [1], [0, 0, 1, 1], [], []>} : vector<46x4xbf16>, vector<4x8xbf16>, vector<46x8xf32> -> vector<46x8xf32>
    %10 = arith.addf %5, %9 : vector<46x8xf32>
    %11 = vector.extract_strided_slice %4 {offsets = [1, 0], sizes = [46, 4], strides = [1, 1]} : vector<64x4xbf16> to vector<46x4xbf16>
    %c0_10 = arith.constant 0 : index
    %c1 = arith.constant 1 : index
    %c0_11 = arith.constant 0 : index
    %c0_12 = arith.constant 0 : index
    %12 = vector.load %arg4[%c0_10, %c1, %c0_11, %c0_12] : memref<1x9x4x8xbf16, #tpu.memory_space<vmem>>, vector<1x1x4x8xbf16>
    %13 = vector.shape_cast %12 : vector<1x1x4x8xbf16> to vector<4x8xbf16>
    %cst_13 = arith.constant dense<0.000000e+00> : vector<46x8xf32>
    %14 = tpu.matmul %11, %13, %cst_13 {dimension_numbers = #tpu.dot_dimension_numbers<[1], [0], [0], [1], [0, 0, 1, 1], [], []>} : vector<46x4xbf16>, vector<4x8xbf16>, vector<46x8xf32> -> vector<46x8xf32>
    %15 = arith.addf %10, %14 : vector<46x8xf32>
    %16 = vector.extract_strided_slice %4 {offsets = [2, 0], sizes = [46, 4], strides = [1, 1]} : vector<64x4xbf16> to vector<46x4xbf16>
    %c0_14 = arith.constant 0 : index
    %c2 = arith.constant 2 : index
    %c0_15 = arith.constant 0 : index
    %c0_16 = arith.constant 0 : index
    %17 = vector.load %arg4[%c0_14, %c2, %c0_15, %c0_16] : memref<1x9x4x8xbf16, #tpu.memory_space<vmem>>, vector<1x1x4x8xbf16>
    %18 = vector.shape_cast %17 : vector<1x1x4x8xbf16> to vector<4x8xbf16>
    %cst_17 = arith.constant dense<0.000000e+00> : vector<46x8xf32>
    %19 = tpu.matmul %16, %18, %cst_17 {dimension_numbers = #tpu.dot_dimension_numbers<[1], [0], [0], [1], [0, 0, 1, 1], [], []>} : vector<46x4xbf16>, vector<4x8xbf16>, vector<46x8xf32> -> vector<46x8xf32>
    %20 = arith.addf %15, %19 : vector<46x8xf32>
    %21 = vector.extract_strided_slice %4 {offsets = [8, 0], sizes = [46, 4], strides = [1, 1]} : vector<64x4xbf16> to vector<46x4xbf16>
    %c0_18 = arith.constant 0 : index
    %c3 = arith.constant 3 : index
    %c0_19 = arith.constant 0 : index
    %c0_20 = arith.constant 0 : index
    %22 = vector.load %arg4[%c0_18, %c3, %c0_19, %c0_20] : memref<1x9x4x8xbf16, #tpu.memory_space<vmem>>, vector<1x1x4x8xbf16>
    %23 = vector.shape_cast %22 : vector<1x1x4x8xbf16> to vector<4x8xbf16>
    %cst_21 = arith.constant dense<0.000000e+00> : vector<46x8xf32>
    %24 = tpu.matmul %21, %23, %cst_21 {dimension_numbers = #tpu.dot_dimension_numbers<[1], [0], [0], [1], [0, 0, 1, 1], [], []>} : vector<46x4xbf16>, vector<4x8xbf16>, vector<46x8xf32> -> vector<46x8xf32>
    %25 = arith.addf %20, %24 : vector<46x8xf32>
    %26 = vector.extract_strided_slice %4 {offsets = [9, 0], sizes = [46, 4], strides = [1, 1]} : vector<64x4xbf16> to vector<46x4xbf16>
    %c0_22 = arith.constant 0 : index
    %c4 = arith.constant 4 : index
    %c0_23 = arith.constant 0 : index
    %c0_24 = arith.constant 0 : index
    %27 = vector.load %arg4[%c0_22, %c4, %c0_23, %c0_24] : memref<1x9x4x8xbf16, #tpu.memory_space<vmem>>, vector<1x1x4x8xbf16>
    %28 = vector.shape_cast %27 : vector<1x1x4x8xbf16> to vector<4x8xbf16>
    %cst_25 = arith.constant dense<0.000000e+00> : vector<46x8xf32>
    %29 = tpu.matmul %26, %28, %cst_25 {dimension_numbers = #tpu.dot_dimension_numbers<[1], [0], [0], [1], [0, 0, 1, 1], [], []>} : vector<46x4xbf16>, vector<4x8xbf16>, vector<46x8xf32> -> vector<46x8xf32>
    %30 = arith.addf %25, %29 : vector<46x8xf32>
    %31 = vector.extract_strided_slice %4 {offsets = [10, 0], sizes = [46, 4], strides = [1, 1]} : vector<64x4xbf16> to vector<46x4xbf16>
    %c0_26 = arith.constant 0 : index
    %c5 = arith.constant 5 : index
    %c0_27 = arith.constant 0 : index
    %c0_28 = arith.constant 0 : index
    %32 = vector.load %arg4[%c0_26, %c5, %c0_27, %c0_28] : memref<1x9x4x8xbf16, #tpu.memory_space<vmem>>, vector<1x1x4x8xbf16>
    %33 = vector.shape_cast %32 : vector<1x1x4x8xbf16> to vector<4x8xbf16>
    %cst_29 = arith.constant dense<0.000000e+00> : vector<46x8xf32>
    %34 = tpu.matmul %31, %33, %cst_29 {dimension_numbers = #tpu.dot_dimension_numbers<[1], [0], [0], [1], [0, 0, 1, 1], [], []>} : vector<46x4xbf16>, vector<4x8xbf16>, vector<46x8xf32> -> vector<46x8xf32>
    %35 = arith.addf %30, %34 : vector<46x8xf32>
    %36 = vector.extract_strided_slice %4 {offsets = [16, 0], sizes = [46, 4], strides = [1, 1]} : vector<64x4xbf16> to vector<46x4xbf16>
    %c0_30 = arith.constant 0 : index
    %c6 = arith.constant 6 : index
    %c0_31 = arith.constant 0 : index
    %c0_32 = arith.constant 0 : index
    %37 = vector.load %arg4[%c0_30, %c6, %c0_31, %c0_32] : memref<1x9x4x8xbf16, #tpu.memory_space<vmem>>, vector<1x1x4x8xbf16>
    %38 = vector.shape_cast %37 : vector<1x1x4x8xbf16> to vector<4x8xbf16>
    %cst_33 = arith.constant dense<0.000000e+00> : vector<46x8xf32>
    %39 = tpu.matmul %36, %38, %cst_33 {dimension_numbers = #tpu.dot_dimension_numbers<[1], [0], [0], [1], [0, 0, 1, 1], [], []>} : vector<46x4xbf16>, vector<4x8xbf16>, vector<46x8xf32> -> vector<46x8xf32>
    %40 = arith.addf %35, %39 : vector<46x8xf32>
    %41 = vector.extract_strided_slice %4 {offsets = [17, 0], sizes = [46, 4], strides = [1, 1]} : vector<64x4xbf16> to vector<46x4xbf16>
    %c0_34 = arith.constant 0 : index
    %c7 = arith.constant 7 : index
    %c0_35 = arith.constant 0 : index
    %c0_36 = arith.constant 0 : index
    %42 = vector.load %arg4[%c0_34, %c7, %c0_35, %c0_36] : memref<1x9x4x8xbf16, #tpu.memory_space<vmem>>, vector<1x1x4x8xbf16>
    %43 = vector.shape_cast %42 : vector<1x1x4x8xbf16> to vector<4x8xbf16>
    %cst_37 = arith.constant dense<0.000000e+00> : vector<46x8xf32>
    %44 = tpu.matmul %41, %43, %cst_37 {dimension_numbers = #tpu.dot_dimension_numbers<[1], [0], [0], [1], [0, 0, 1, 1], [], []>} : vector<46x4xbf16>, vector<4x8xbf16>, vector<46x8xf32> -> vector<46x8xf32>
    %45 = arith.addf %40, %44 : vector<46x8xf32>
    %46 = vector.extract_strided_slice %4 {offsets = [18, 0], sizes = [46, 4], strides = [1, 1]} : vector<64x4xbf16> to vector<46x4xbf16>
    %c0_38 = arith.constant 0 : index
    %c8 = arith.constant 8 : index
    %c0_39 = arith.constant 0 : index
    %c0_40 = arith.constant 0 : index
    %47 = vector.load %arg4[%c0_38, %c8, %c0_39, %c0_40] : memref<1x9x4x8xbf16, #tpu.memory_space<vmem>>, vector<1x1x4x8xbf16>
    %48 = vector.shape_cast %47 : vector<1x1x4x8xbf16> to vector<4x8xbf16>
    %cst_41 = arith.constant dense<0.000000e+00> : vector<46x8xf32>
    %49 = tpu.matmul %46, %48, %cst_41 {dimension_numbers = #tpu.dot_dimension_numbers<[1], [0], [0], [1], [0, 0, 1, 1], [], []>} : vector<46x4xbf16>, vector<4x8xbf16>, vector<46x8xf32> -> vector<46x8xf32>
    %50 = arith.addf %45, %49 : vector<46x8xf32>
    %c0_42 = arith.constant 0 : index
    %c0_43 = arith.constant 0 : index
    %51 = vector.load %arg7[%c0_42, %c0_43] : memref<46x8xf32, #tpu.memory_space<vmem>>, vector<46x8xf32>
    tpu.vector_store %arg7[%c0_42, %c0_43], %50 {strides = array<i32>} : memref<46x8xf32, #tpu.memory_space<vmem>>, vector<46x8xf32>,
    %c2_i32 = arith.constant 2 : i32
    %52 = arith.cmpi eq, %arg2, %c2_i32 : i32
    %53 = arith.extui %52 : i1 to i32
    %c0_i32_44 = arith.constant 0 : i32
    %54 = arith.cmpi ne, %53, %c0_i32_44 : i32
    scf.if %54 {
      %c0_45 = arith.constant 0 : index
      %c0_46 = arith.constant 0 : index
      %55 = vector.load %arg7[%c0_45, %c0_46] : memref<46x8xf32, #tpu.memory_space<vmem>>, vector<46x8xf32>
      %c0_47 = arith.constant 0 : index
      %c0_48 = arith.constant 0 : index
      %56 = vector.load %arg5[%c0_47, %c0_48] : memref<1x8xf32, #tpu.memory_space<vmem>>, vector<1x8xf32>
      %57 = vector.broadcast %56 : vector<1x8xf32> to vector<46x8xf32>
      %58 = arith.addf %55, %57 : vector<46x8xf32>
      %cst_49 = arith.constant 0.000000e+00 : f32
      %59 = vector.broadcast %cst_49 : f32 to vector<46x8xf32>
      %60 = arith.maximumf %58, %59 : vector<46x8xf32>
      %c0_50 = arith.constant 0 : index
      %c0_51 = arith.constant 0 : index
      %c0_52 = arith.constant 0 : index
      %c0_53 = arith.constant 0 : index
      %61 = vector.load %arg6[%c0_50, %c0_51, %c0_52, %c0_53] : memref<1x1x46x8xf32, #tpu.memory_space<vmem>>, vector<1x1x46x8xf32>
      %62 = vector.shape_cast %61 : vector<1x1x46x8xf32> to vector<46x8xf32>
      %63 = vector.shape_cast %60 : vector<46x8xf32> to vector<1x1x46x8xf32>
      tpu.vector_store %arg6[%c0_50, %c0_51, %c0_52, %c0_53], %63 {strides = array<i32>} : memref<1x1x46x8xf32, #tpu.memory_space<vmem>>, vector<1x1x46x8xf32>,
    } else {
    }
    return
  }
  func.func @transform_0(%arg0: i32, %arg1: i32, %arg2: i32) -> (i32, i32, i32, i32) {
    %0 = arith.addi %arg1, %arg2 : i32
    %c0_i32 = arith.constant 0 : i32
    %c0_i32_0 = arith.constant 0 : i32
    %c0_i32_1 = arith.constant 0 : i32
    return %arg0, %0, %c0_i32, %c0_i32_0 : i32, i32, i32, i32
  }
  func.func @transform_1(%arg0: i32, %arg1: i32, %arg2: i32) -> (i32, i32, i32, i32) {
    %c0_i32 = arith.constant 0 : i32
    %c0_i32_0 = arith.constant 0 : i32
    %c0_i32_1 = arith.constant 0 : i32
    %c0_i32_2 = arith.constant 0 : i32
    return %arg2, %c0_i32, %c0_i32_0, %c0_i32_1 : i32, i32, i32, i32
  }
  func.func @transform_2(%arg0: i32, %arg1: i32, %arg2: i32) -> (i32, i32) {
    %c0_i32 = arith.constant 0 : i32
    %c0_i32_0 = arith.constant 0 : i32
    %c0_i32_1 = arith.constant 0 : i32
    return %c0_i32, %c0_i32_0 : i32, i32
  }
  func.func @transform_3(%arg0: i32, %arg1: i32, %arg2: i32) -> (i32, i32, i32, i32) {
    %c0_i32 = arith.constant 0 : i32
    %c0_i32_0 = arith.constant 0 : i32
    %c0_i32_1 = arith.constant 0 : i32
    return %arg0, %arg1, %c0_i32, %c0_i32_0 : i32, i32, i32, i32
  }
}

module attributes {stable_mosaic.version = 11 : i64} {
  func.func @_direct_conv3d_kernel(%arg0: i32, %arg1: i32, %arg2: i32, %arg3: memref<1x1x36x8xbf16, #tpu.memory_space<vmem>>, %arg4: memref<1x9x8x8xbf16, #tpu.memory_space<vmem>>, %arg5: memref<1x8xf32, #tpu.memory_space<vmem>>, %arg6: memref<1x1x22x8xf32, #tpu.memory_space<vmem>>, %arg7: memref<22x8xf32, #tpu.memory_space<vmem>>) attributes {dimension_semantics = [#tpu.dimension_semantics<parallel>, #tpu.dimension_semantics<parallel>, #tpu.dimension_semantics<arbitrary>], iteration_bounds = array<i64: 2, 4, 3>, scalar_prefetch = 0 : i64, scratch_operands = 1 : i64, tpu.core_type = #tpu.core_type<tc>, window_params = [{transform_indices = @transform_0, window_bounds = array<i64: 1, 1, 36, 8>}, {transform_indices = @transform_1, window_bounds = array<i64: 1, 9, 8, 8>}, {pipeline_mode = #tpu.pipeline_mode<synchronous>, transform_indices = @transform_2, window_bounds = array<i64: 1, 8>}, {transform_indices = @transform_3, window_bounds = array<i64: 1, 1, 22, 8>}]} {
    %c0_i32 = arith.constant 0 : i32
    %0 = arith.cmpi eq, %arg2, %c0_i32 : i32
    %1 = arith.extui %0 : i1 to i32
    %c0_i32_0 = arith.constant 0 : i32
    %2 = arith.cmpi ne, %1, %c0_i32_0 : i32
    scf.if %2 {
      %cst_45 = arith.constant 0.000000e+00 : f32
      %55 = vector.broadcast %cst_45 : f32 to vector<22x8xf32>
      %c0_46 = arith.constant 0 : index
      %c0_47 = arith.constant 0 : index
      %56 = vector.load %arg7[%c0_46, %c0_47] : memref<22x8xf32, #tpu.memory_space<vmem>>, vector<22x8xf32>
      tpu.vector_store %arg7[%c0_46, %c0_47], %55 {strides = array<i32>} : memref<22x8xf32, #tpu.memory_space<vmem>>, vector<22x8xf32>,
    } else {
    }
    %c0 = arith.constant 0 : index
    %c0_1 = arith.constant 0 : index
    %c0_2 = arith.constant 0 : index
    %c0_3 = arith.constant 0 : index
    %3 = vector.load %arg3[%c0, %c0_1, %c0_2, %c0_3] : memref<1x1x36x8xbf16, #tpu.memory_space<vmem>>, vector<1x1x36x8xbf16>
    %4 = vector.shape_cast %3 : vector<1x1x36x8xbf16> to vector<36x8xbf16>
    %c0_4 = arith.constant 0 : index
    %c0_5 = arith.constant 0 : index
    %5 = vector.load %arg7[%c0_4, %c0_5] : memref<22x8xf32, #tpu.memory_space<vmem>>, vector<22x8xf32>
    %6 = vector.extract_strided_slice %4 {offsets = [0, 0], sizes = [22, 8], strides = [1, 1]} : vector<36x8xbf16> to vector<22x8xbf16>
    %c0_6 = arith.constant 0 : index
    %c0_7 = arith.constant 0 : index
    %c0_8 = arith.constant 0 : index
    %c0_9 = arith.constant 0 : index
    %7 = vector.load %arg4[%c0_6, %c0_7, %c0_8, %c0_9] : memref<1x9x8x8xbf16, #tpu.memory_space<vmem>>, vector<1x1x8x8xbf16>
    %8 = vector.shape_cast %7 : vector<1x1x8x8xbf16> to vector<8x8xbf16>
    %cst = arith.constant dense<0.000000e+00> : vector<22x8xf32>
    %9 = tpu.matmul %6, %8, %cst {dimension_numbers = #tpu.dot_dimension_numbers<[1], [0], [0], [1], [0, 0, 1, 1], [], []>} : vector<22x8xbf16>, vector<8x8xbf16>, vector<22x8xf32> -> vector<22x8xf32>
    %10 = arith.addf %5, %9 : vector<22x8xf32>
    %11 = vector.extract_strided_slice %4 {offsets = [1, 0], sizes = [22, 8], strides = [1, 1]} : vector<36x8xbf16> to vector<22x8xbf16>
    %c0_10 = arith.constant 0 : index
    %c1 = arith.constant 1 : index
    %c0_11 = arith.constant 0 : index
    %c0_12 = arith.constant 0 : index
    %12 = vector.load %arg4[%c0_10, %c1, %c0_11, %c0_12] : memref<1x9x8x8xbf16, #tpu.memory_space<vmem>>, vector<1x1x8x8xbf16>
    %13 = vector.shape_cast %12 : vector<1x1x8x8xbf16> to vector<8x8xbf16>
    %cst_13 = arith.constant dense<0.000000e+00> : vector<22x8xf32>
    %14 = tpu.matmul %11, %13, %cst_13 {dimension_numbers = #tpu.dot_dimension_numbers<[1], [0], [0], [1], [0, 0, 1, 1], [], []>} : vector<22x8xbf16>, vector<8x8xbf16>, vector<22x8xf32> -> vector<22x8xf32>
    %15 = arith.addf %10, %14 : vector<22x8xf32>
    %16 = vector.extract_strided_slice %4 {offsets = [2, 0], sizes = [22, 8], strides = [1, 1]} : vector<36x8xbf16> to vector<22x8xbf16>
    %c0_14 = arith.constant 0 : index
    %c2 = arith.constant 2 : index
    %c0_15 = arith.constant 0 : index
    %c0_16 = arith.constant 0 : index
    %17 = vector.load %arg4[%c0_14, %c2, %c0_15, %c0_16] : memref<1x9x8x8xbf16, #tpu.memory_space<vmem>>, vector<1x1x8x8xbf16>
    %18 = vector.shape_cast %17 : vector<1x1x8x8xbf16> to vector<8x8xbf16>
    %cst_17 = arith.constant dense<0.000000e+00> : vector<22x8xf32>
    %19 = tpu.matmul %16, %18, %cst_17 {dimension_numbers = #tpu.dot_dimension_numbers<[1], [0], [0], [1], [0, 0, 1, 1], [], []>} : vector<22x8xbf16>, vector<8x8xbf16>, vector<22x8xf32> -> vector<22x8xf32>
    %20 = arith.addf %15, %19 : vector<22x8xf32>
    %21 = vector.extract_strided_slice %4 {offsets = [6, 0], sizes = [22, 8], strides = [1, 1]} : vector<36x8xbf16> to vector<22x8xbf16>
    %c0_18 = arith.constant 0 : index
    %c3 = arith.constant 3 : index
    %c0_19 = arith.constant 0 : index
    %c0_20 = arith.constant 0 : index
    %22 = vector.load %arg4[%c0_18, %c3, %c0_19, %c0_20] : memref<1x9x8x8xbf16, #tpu.memory_space<vmem>>, vector<1x1x8x8xbf16>
    %23 = vector.shape_cast %22 : vector<1x1x8x8xbf16> to vector<8x8xbf16>
    %cst_21 = arith.constant dense<0.000000e+00> : vector<22x8xf32>
    %24 = tpu.matmul %21, %23, %cst_21 {dimension_numbers = #tpu.dot_dimension_numbers<[1], [0], [0], [1], [0, 0, 1, 1], [], []>} : vector<22x8xbf16>, vector<8x8xbf16>, vector<22x8xf32> -> vector<22x8xf32>
    %25 = arith.addf %20, %24 : vector<22x8xf32>
    %26 = vector.extract_strided_slice %4 {offsets = [7, 0], sizes = [22, 8], strides = [1, 1]} : vector<36x8xbf16> to vector<22x8xbf16>
    %c0_22 = arith.constant 0 : index
    %c4 = arith.constant 4 : index
    %c0_23 = arith.constant 0 : index
    %c0_24 = arith.constant 0 : index
    %27 = vector.load %arg4[%c0_22, %c4, %c0_23, %c0_24] : memref<1x9x8x8xbf16, #tpu.memory_space<vmem>>, vector<1x1x8x8xbf16>
    %28 = vector.shape_cast %27 : vector<1x1x8x8xbf16> to vector<8x8xbf16>
    %cst_25 = arith.constant dense<0.000000e+00> : vector<22x8xf32>
    %29 = tpu.matmul %26, %28, %cst_25 {dimension_numbers = #tpu.dot_dimension_numbers<[1], [0], [0], [1], [0, 0, 1, 1], [], []>} : vector<22x8xbf16>, vector<8x8xbf16>, vector<22x8xf32> -> vector<22x8xf32>
    %30 = arith.addf %25, %29 : vector<22x8xf32>
    %31 = vector.extract_strided_slice %4 {offsets = [8, 0], sizes = [22, 8], strides = [1, 1]} : vector<36x8xbf16> to vector<22x8xbf16>
    %c0_26 = arith.constant 0 : index
    %c5 = arith.constant 5 : index
    %c0_27 = arith.constant 0 : index
    %c0_28 = arith.constant 0 : index
    %32 = vector.load %arg4[%c0_26, %c5, %c0_27, %c0_28] : memref<1x9x8x8xbf16, #tpu.memory_space<vmem>>, vector<1x1x8x8xbf16>
    %33 = vector.shape_cast %32 : vector<1x1x8x8xbf16> to vector<8x8xbf16>
    %cst_29 = arith.constant dense<0.000000e+00> : vector<22x8xf32>
    %34 = tpu.matmul %31, %33, %cst_29 {dimension_numbers = #tpu.dot_dimension_numbers<[1], [0], [0], [1], [0, 0, 1, 1], [], []>} : vector<22x8xbf16>, vector<8x8xbf16>, vector<22x8xf32> -> vector<22x8xf32>
    %35 = arith.addf %30, %34 : vector<22x8xf32>
    %36 = vector.extract_strided_slice %4 {offsets = [12, 0], sizes = [22, 8], strides = [1, 1]} : vector<36x8xbf16> to vector<22x8xbf16>
    %c0_30 = arith.constant 0 : index
    %c6 = arith.constant 6 : index
    %c0_31 = arith.constant 0 : index
    %c0_32 = arith.constant 0 : index
    %37 = vector.load %arg4[%c0_30, %c6, %c0_31, %c0_32] : memref<1x9x8x8xbf16, #tpu.memory_space<vmem>>, vector<1x1x8x8xbf16>
    %38 = vector.shape_cast %37 : vector<1x1x8x8xbf16> to vector<8x8xbf16>
    %cst_33 = arith.constant dense<0.000000e+00> : vector<22x8xf32>
    %39 = tpu.matmul %36, %38, %cst_33 {dimension_numbers = #tpu.dot_dimension_numbers<[1], [0], [0], [1], [0, 0, 1, 1], [], []>} : vector<22x8xbf16>, vector<8x8xbf16>, vector<22x8xf32> -> vector<22x8xf32>
    %40 = arith.addf %35, %39 : vector<22x8xf32>
    %41 = vector.extract_strided_slice %4 {offsets = [13, 0], sizes = [22, 8], strides = [1, 1]} : vector<36x8xbf16> to vector<22x8xbf16>
    %c0_34 = arith.constant 0 : index
    %c7 = arith.constant 7 : index
    %c0_35 = arith.constant 0 : index
    %c0_36 = arith.constant 0 : index
    %42 = vector.load %arg4[%c0_34, %c7, %c0_35, %c0_36] : memref<1x9x8x8xbf16, #tpu.memory_space<vmem>>, vector<1x1x8x8xbf16>
    %43 = vector.shape_cast %42 : vector<1x1x8x8xbf16> to vector<8x8xbf16>
    %cst_37 = arith.constant dense<0.000000e+00> : vector<22x8xf32>
    %44 = tpu.matmul %41, %43, %cst_37 {dimension_numbers = #tpu.dot_dimension_numbers<[1], [0], [0], [1], [0, 0, 1, 1], [], []>} : vector<22x8xbf16>, vector<8x8xbf16>, vector<22x8xf32> -> vector<22x8xf32>
    %45 = arith.addf %40, %44 : vector<22x8xf32>
    %46 = vector.extract_strided_slice %4 {offsets = [14, 0], sizes = [22, 8], strides = [1, 1]} : vector<36x8xbf16> to vector<22x8xbf16>
    %c0_38 = arith.constant 0 : index
    %c8 = arith.constant 8 : index
    %c0_39 = arith.constant 0 : index
    %c0_40 = arith.constant 0 : index
    %47 = vector.load %arg4[%c0_38, %c8, %c0_39, %c0_40] : memref<1x9x8x8xbf16, #tpu.memory_space<vmem>>, vector<1x1x8x8xbf16>
    %48 = vector.shape_cast %47 : vector<1x1x8x8xbf16> to vector<8x8xbf16>
    %cst_41 = arith.constant dense<0.000000e+00> : vector<22x8xf32>
    %49 = tpu.matmul %46, %48, %cst_41 {dimension_numbers = #tpu.dot_dimension_numbers<[1], [0], [0], [1], [0, 0, 1, 1], [], []>} : vector<22x8xbf16>, vector<8x8xbf16>, vector<22x8xf32> -> vector<22x8xf32>
    %50 = arith.addf %45, %49 : vector<22x8xf32>
    %c0_42 = arith.constant 0 : index
    %c0_43 = arith.constant 0 : index
    %51 = vector.load %arg7[%c0_42, %c0_43] : memref<22x8xf32, #tpu.memory_space<vmem>>, vector<22x8xf32>
    tpu.vector_store %arg7[%c0_42, %c0_43], %50 {strides = array<i32>} : memref<22x8xf32, #tpu.memory_space<vmem>>, vector<22x8xf32>,
    %c2_i32 = arith.constant 2 : i32
    %52 = arith.cmpi eq, %arg2, %c2_i32 : i32
    %53 = arith.extui %52 : i1 to i32
    %c0_i32_44 = arith.constant 0 : i32
    %54 = arith.cmpi ne, %53, %c0_i32_44 : i32
    scf.if %54 {
      %c0_45 = arith.constant 0 : index
      %c0_46 = arith.constant 0 : index
      %55 = vector.load %arg7[%c0_45, %c0_46] : memref<22x8xf32, #tpu.memory_space<vmem>>, vector<22x8xf32>
      %c0_47 = arith.constant 0 : index
      %c0_48 = arith.constant 0 : index
      %56 = vector.load %arg5[%c0_47, %c0_48] : memref<1x8xf32, #tpu.memory_space<vmem>>, vector<1x8xf32>
      %57 = vector.broadcast %56 : vector<1x8xf32> to vector<22x8xf32>
      %58 = arith.addf %55, %57 : vector<22x8xf32>
      %cst_49 = arith.constant 0.000000e+00 : f32
      %59 = vector.broadcast %cst_49 : f32 to vector<22x8xf32>
      %60 = arith.maximumf %58, %59 : vector<22x8xf32>
      %c0_50 = arith.constant 0 : index
      %c0_51 = arith.constant 0 : index
      %c0_52 = arith.constant 0 : index
      %c0_53 = arith.constant 0 : index
      %61 = vector.load %arg6[%c0_50, %c0_51, %c0_52, %c0_53] : memref<1x1x22x8xf32, #tpu.memory_space<vmem>>, vector<1x1x22x8xf32>
      %62 = vector.shape_cast %61 : vector<1x1x22x8xf32> to vector<22x8xf32>
      %63 = vector.shape_cast %60 : vector<22x8xf32> to vector<1x1x22x8xf32>
      tpu.vector_store %arg6[%c0_50, %c0_51, %c0_52, %c0_53], %63 {strides = array<i32>} : memref<1x1x22x8xf32, #tpu.memory_space<vmem>>, vector<1x1x22x8xf32>,
    } else {
    }
    return
  }
  func.func @transform_0(%arg0: i32, %arg1: i32, %arg2: i32) -> (i32, i32, i32, i32) {
    %0 = arith.addi %arg1, %arg2 : i32
    %c0_i32 = arith.constant 0 : i32
    %c0_i32_0 = arith.constant 0 : i32
    %c0_i32_1 = arith.constant 0 : i32
    return %arg0, %0, %c0_i32, %c0_i32_0 : i32, i32, i32, i32
  }
  func.func @transform_1(%arg0: i32, %arg1: i32, %arg2: i32) -> (i32, i32, i32, i32) {
    %c0_i32 = arith.constant 0 : i32
    %c0_i32_0 = arith.constant 0 : i32
    %c0_i32_1 = arith.constant 0 : i32
    %c0_i32_2 = arith.constant 0 : i32
    return %arg2, %c0_i32, %c0_i32_0, %c0_i32_1 : i32, i32, i32, i32
  }
  func.func @transform_2(%arg0: i32, %arg1: i32, %arg2: i32) -> (i32, i32) {
    %c0_i32 = arith.constant 0 : i32
    %c0_i32_0 = arith.constant 0 : i32
    %c0_i32_1 = arith.constant 0 : i32
    return %c0_i32, %c0_i32_0 : i32, i32
  }
  func.func @transform_3(%arg0: i32, %arg1: i32, %arg2: i32) -> (i32, i32, i32, i32) {
    %c0_i32 = arith.constant 0 : i32
    %c0_i32_0 = arith.constant 0 : i32
    %c0_i32_1 = arith.constant 0 : i32
    return %arg0, %arg1, %c0_i32, %c0_i32_0 : i32, i32, i32, i32
  }
}

</mosaic_0001>

<llo_original>
// kernel: _forward_impl.2
$region0: #{_forward_impl.2}
  #allocation0 [shape = 'u32[]', space=smem, size = 0x4, offset = 0x4, fixed_abs, tag = 'smem constant byte address 0x4 - core index']
  #allocation1 [shape = 'u32[72,128]{1,0:T(1,128)}', space=vmem, size = 0x9000, scoped, tag = 'internal scratch']
  #allocation2 [shape = 'f32[46,8]{1,0:T(8,128)}', space=vmem, size = 0x6000, scoped, tag = 'scratch operand']
  %s0 = inlined_call_operand.vmem [shape: bf16[2,8,64,4], index: 0, kind: input, shape index: {}]
  %s1 = inlined_call_operand.vmem [shape: bf16[3,9,4,8], index: 1, kind: input, shape index: {}]
  %s2 = inlined_call_operand.vmem [shape: f32[1,8], index: 2, kind: input, shape index: {}]
  %s3 = inlined_call_operand.vmem [shape: f32[2,6,46,8], index: 3, kind: output, shape index: {}]
  %s4 = sld [smem:[#allocation0]]
  $region53: #{_forward_impl.2} parent=0
    _
  %s6 = ssub.s32 1, %s4
  %s7 = scalar_select 0, %s6, %s4
  loop: start=0, step=1, limit=38
  $region2: #{_forward_impl.2} parent=0 // loop_pre_header
    _
  $region3: #{_forward_impl.2} parent=0 // loop_header
    %s9 = sphi 0, %s13
    %p10 = scmp.ge.s32.totalorder %s9, 38
    %s16 = sphi 0, %s35
    %s17 = sphi 0, %s31
    %s18 = sphi 0, %s27
    %s19 = sphi 0, %s16
    %s20 = sphi 0, %s17
    %s21 = sphi 0, %s18
    %s22 = sphi 0, %s19
    %s23 = sphi 0, %s20
    %s24 = sphi 0, %s21
    %s42 = sphi 0, %s44
    %s45 = sphi 0, %s42
    %s46 = sphi 0, %s45
    %s62 = sphi 0, %s46
    %s68 = sphi 0, %s70
    %s71 = sphi 0, %s68
    %s72 = sphi 0, %s71
    %s88 = sphi 0, %s72
    %s92 = sphi 0, %s92
    %s94 = sphi 0, %s92
    %s95 = sphi 0, %s94
    %s109 = sphi 0, %s95
    %s117 = sphi 0, %s119
    %s120 = sphi 0, %s117
    %s121 = sphi 0, %s120
    %s137 = sphi 0, %s121
  $region4: #{_forward_impl.2} parent=0 // loop_header_branch
    %12 = sbr.rel (%p10) target = $region8
  $region5: #{_forward_impl.2} parent=0 // loop_body
    %s14 = ssub.s32 %s9, 1
    %s15 = ssub.s32 %s9, 2
    %s25 = sadd.s32 1, %s18
    %p26 = scmp.ge.s32.totalorder %s25, 3
    %s27 = scalar_select %p26, 0, %s25
    %s28 = sadd.s32 1, %s17
    %s29 = scalar_select %p26, %s28, %s17
    %p30 = scmp.ge.s32.totalorder %s29, 6
    %s31 = scalar_select %p30, 0, %s29
    %s32 = sadd.s32 1, %s16
    %s33 = scalar_select %p30, %s32, %s16
    %p34 = scmp.ge.s32.totalorder %s33, 2
    %s35 = scalar_select %p34, 0, %s33
    %s36 = sadd.s32 %s17, %s18
    %s37 = sadd.s32 %s31, %s27
    %s38 = ssub.s32 %s16, %s35
    %s39 = ssub.s32 %s36, %s37
    %s40 = sor.u32 %s38, %s39
    %p41 = scmp.eq.s32.totalorder %s40, 0
    %s43 = sadd.s32 %s42, 1
    %s44 = scalar_select %p41, %s42, %s43
    %p47 = pneg %p41
    %p48 = scmp.eq.s32.totalorder %s9, 35
    %p49 = por %p47, %p48
    %p50 = scmp.ne.s32.totalorder %s42, %s45
    %p51 = scmp.eq.s32.totalorder %s9, 0
    %p52 = por %p50, %p51
    %p53 = scmp.ne.s32.totalorder %s42, %s45
    %p54 = scmp.eq.s32.totalorder %s14, 35
    %p55 = por %p53, %p54
    %p56 = scmp.ne.s32.totalorder %s45, %s46
    %p57 = scmp.eq.s32.totalorder %s14, 0
    %p58 = por %p56, %p57
    %p59 = scmp.ne.s32.totalorder %s45, %s46
    %p60 = scmp.eq.s32.totalorder %s15, 35
    %p61 = por %p59, %p60
    %p63 = scmp.ne.s32.totalorder %s46, %s62
    %p64 = scmp.eq.s32.totalorder %s15, 0
    %p65 = por %p63, %p64
    %s66 = ssub.s32 %s18, %s27
    %p67 = scmp.eq.s32.totalorder %s66, 0
    %s69 = sadd.s32 %s68, 1
    %s70 = scalar_select %p67, %s68, %s69
    %p73 = pneg %p67
    %p74 = scmp.eq.s32.totalorder %s9, 35
    %p75 = por %p73, %p74
    %p76 = scmp.ne.s32.totalorder %s68, %s71
    %p77 = scmp.eq.s32.totalorder %s9, 0
    %p78 = por %p76, %p77
    %p79 = scmp.ne.s32.totalorder %s68, %s71
    %p80 = scmp.eq.s32.totalorder %s14, 35
    %p81 = por %p79, %p80
    %p82 = scmp.ne.s32.totalorder %s71, %s72
    %p83 = scmp.eq.s32.totalorder %s14, 0
    %p84 = por %p82, %p83
    %p85 = scmp.ne.s32.totalorder %s71, %s72
    %p86 = scmp.eq.s32.totalorder %s15, 35
    %p87 = por %p85, %p86
    %p89 = scmp.ne.s32.totalorder %s72, %s88
    %p90 = scmp.eq.s32.totalorder %s15, 0
    %p91 = por %p89, %p90
    %s93 = sadd.s32 %s92, 1
    %p96 = scmp.eq.s32.totalorder %s9, 35
    %p97 = scmp.ne.s32.totalorder %s92, %s94
    %p98 = scmp.eq.s32.totalorder %s9, 0
    %p99 = por %p97, %p98
    %p100 = scmp.ne.s32.totalorder %s92, %s94
    %p101 = scmp.eq.s32.totalorder %s14, 35
    %p102 = por %p100, %p101
    %p103 = scmp.ne.s32.totalorder %s94, %s95
    %p104 = scmp.eq.s32.totalorder %s14, 0
    %p105 = por %p103, %p104
    %p106 = scmp.ne.s32.totalorder %s94, %s95
    %p107 = scmp.eq.s32.totalorder %s15, 35
    %p108 = por %p106, %p107
    %p110 = scmp.ne.s32.totalorder %s95, %s109
    %p111 = scmp.eq.s32.totalorder %s15, 0
    %p112 = por %p110, %p111
    %s113 = ssub.s32 %s16, %s35
    %s114 = ssub.s32 %s17, %s31
    %s115 = sor.u32 %s113, %s114
    %p116 = scmp.eq.s32.totalorder %s115, 0
    %s118 = sadd.s32 %s117, 1
    %s119 = scalar_select %p116, %s117, %s118
    %p122 = pneg %p116
    %p123 = scmp.eq.s32.totalorder %s9, 35
    %p124 = por %p122, %p123
    %p125 = scmp.ne.s32.totalorder %s117, %s120
    %p126 = scmp.eq.s32.totalorder %s9, 0
    %p127 = por %p125, %p126
    %p128 = scmp.ne.s32.totalorder %s117, %s120
    %p129 = scmp.eq.s32.totalorder %s14, 35
    %p130 = por %p128, %p129
    %p131 = scmp.ne.s32.totalorder %s120, %s121
    %p132 = scmp.eq.s32.totalorder %s14, 0
    %p133 = por %p131, %p132
    %p134 = scmp.ne.s32.totalorder %s120, %s121
    %p135 = scmp.eq.s32.totalorder %s15, 35
    %p136 = por %p134, %p135
    %p138 = scmp.ne.s32.totalorder %s121, %s137
    %p139 = scmp.eq.s32.totalorder %s15, 0
    %p140 = por %p138, %p139
    %p141 = scmp.le.s32.totalorder 1, %s9
    %p142 = scmp.lt.s32.totalorder %s9, 37
    %p143 = pnand %p141, %p142
    %p144 = pneg %p143
    // Predicated region
    $region9: #{_forward_impl.2} parent=5 // pred_check
      _
    $region10: #{_forward_impl.2} parent=5 // pred_check_branch
      %146 = sbr.rel (%p143) target = $region12
    $region11: #{_forward_impl.2} parent=5 // pred_region
      %s147 = ssub.s32 %s9, 1
      // Predicated region
      $region13: #{_forward_impl.2} parent=11 // pred_check
        %p148 = pneg %p105
      $region14: #{_forward_impl.2} parent=11 // pred_check_branch
        %150 = sbr.rel (%p148) target = $region16
      $region15: #{_forward_impl.2} parent=11 // pred_region
        _
      $region16: #{_forward_impl.2} parent=11 // pred_fallthru
        _
    $region12: #{_forward_impl.2} parent=5 // pred_fallthru
      _
    %p151 = scmp.lt.s32.totalorder %s9, 36
    // Predicated region
    $region17: #{_forward_impl.2} parent=5 // pred_check
      %p152 = pneg %p151
    $region18: #{_forward_impl.2} parent=5 // pred_check_branch
      %154 = sbr.rel (%p152) target = $region20
    $region19: #{_forward_impl.2} parent=5 // pred_region
      // Predicated region
      $region21: #{_forward_impl.2} parent=19 // pred_check
        %p155 = pneg %p52
      $region22: #{_forward_impl.2} parent=19 // pred_check_branch
        %157 = sbr.rel (%p155) target = $region24
      $region23: #{_forward_impl.2} parent=19 // pred_region
        %s158 = sadd.s32 %s17, %s18
        %p159 = scmp.lt.s32.totalorder %s16, 1
        %s160 = scalar_select %p159, %s16, 1
        %p161 = scmp.lt.s32.totalorder %s158, 7
        %s162 = scalar_select %p161, %s158, 7
        %s163 = smul.addr %s162, 8
        %s164 = smul.addr %s160, 64
        %s165 = sadd.s32 %s163, %s164
        %s166 = smul.addr %s165, 4
        %s167 = scalar_lea.vmem %s0, %s166
        %s168 = sadd.s32 %s17, %s18
      $region24: #{_forward_impl.2} parent=19 // pred_fallthru
        _
      // Predicated region
      $region25: #{_forward_impl.2} parent=19 // pred_check
        %p169 = pneg %p78
      $region26: #{_forward_impl.2} parent=19 // pred_check_branch
        %171 = sbr.rel (%p169) target = $region28
      $region27: #{_forward_impl.2} parent=19 // pred_region
        %p172 = scmp.lt.s32.totalorder %s18, 2
        %s173 = scalar_select %p172, %s18, 2
        %s174 = smul.addr %s173, 9
        %s175 = smul.addr %s174, 2
        %s176 = scalar_lea.vmem %s1, %s175
      $region28: #{_forward_impl.2} parent=19 // pred_fallthru
        _
    $region20: #{_forward_impl.2} parent=5 // pred_fallthru
      _
    %p177 = scmp.le.s32.totalorder 1, %s9
    %p178 = scmp.lt.s32.totalorder %s9, 37
    %p179 = pnand %p177, %p178
    %p180 = pneg %p179
    // Predicated region
    $region29: #{_forward_impl.2} parent=5 // pred_check
      _
    $region30: #{_forward_impl.2} parent=5 // pred_check_branch
      %182 = sbr.rel (%p179) target = $region32
    $region31: #{_forward_impl.2} parent=5 // pred_region
      %s183 = ssub.s32 %s9, 1
      %s184 = sadd.s32 %s20, %s21
      %p185 = scmp.lt.s32.totalorder %s19, 1
      %s186 = scalar_select %p185, %s19, 1
      %p187 = scmp.lt.s32.totalorder %s184, 7
      %s188 = scalar_select %p187, %s184, 7
      %s189 = smul.addr %s188, 8
      %s190 = smul.addr %s186, 64
      %s191 = sadd.s32 %s189, %s190
      %s192 = smul.addr %s191, 4
      %s193 = scalar_lea.vmem %s0, %s192
      %p194 = pneg %p58
      %p195 = pneg %p55
      %p196 = scmp.lt.s32.totalorder %s21, 2
      %s197 = scalar_select %p196, %s21, 2
      %s198 = smul.addr %s197, 9
      %s199 = smul.addr %s198, 2
      %s200 = scalar_lea.vmem %s1, %s199
      %p201 = pneg %p84
      %p202 = pneg %p81
      %p203 = pneg %p105
      %p204 = pneg %p102
      %p205 = pneg %p133
      %p206 = pneg %p130
      %p207 = scmp.lt.s32.totalorder %s19, 1
      %s208 = scalar_select %p207, %s19, 1
      %p209 = scmp.lt.s32.totalorder %s20, 5
      %s210 = scalar_select %p209, %s20, 5
      %s211 = smul.addr %s210, 6
      %s212 = smul.addr %s208, 36
      %s213 = sadd.s32 %s211, %s212
      %s214 = smul.addr %s213, 8
      %s215 = scalar_lea.vmem %s3, %s214
      %s216 = sadd.s32 %s20, %s21
      %p217 = scmp.lt.s32.totalorder %s19, 1
      %s218 = scalar_select %p217, %s19, 1
      %p219 = scmp.lt.s32.totalorder %s216, 7
      %s220 = scalar_select %p219, %s216, 7
      %s221 = smul.addr %s220, 8
      %s222 = smul.addr %s218, 64
      %s223 = sadd.s32 %s221, %s222
      %s224 = smul.addr %s223, 4
      %s225 = scalar_lea.vmem %s0, %s224
      %s226 = sadd.s32 %s20, %s21
      %p227 = scmp.lt.s32.totalorder %s21, 2
      %s228 = scalar_select %p227, %s21, 2
      %s229 = smul.addr %s228, 9
      %s230 = smul.addr %s229, 2
      %s231 = scalar_lea.vmem %s1, %s230
      %p232 = scmp.lt.s32.totalorder %s19, 1
      %s233 = scalar_select %p232, %s19, 1
      %p234 = scmp.lt.s32.totalorder %s20, 5
      %s235 = scalar_select %p234, %s20, 5
      %s236 = smul.addr %s235, 6
      %s237 = smul.addr %s233, 36
      %s238 = sadd.s32 %s236, %s237
      %s239 = smul.addr %s238, 8
      %s240 = scalar_lea.vmem %s3, %s239
      %p242 = scmp.eq.s32.totalorder %s21, 0
      // Predicated region
      $region33: #{_forward_impl.2} parent=31 // pred_check
        %p243 = pneg %p242
      $region34: #{_forward_impl.2} parent=31 // pred_check_branch
        %245 = sbr.rel (%p243) target = $region36
      $region35: #{_forward_impl.2} parent=31 // pred_region
        %vm246 = vcmask 64512
        %247 = vst.msk [vmem:[#allocation2] sm:$0xff] %vm246, 0.0
        %248 = vst.msk [vmem:[#allocation2 + $0x8] sm:$0xff] %vm246, 0.0
        %249 = vst.msk [vmem:[#allocation2 + $0x10] sm:$0xff] %vm246, 0.0
        %250 = vst.msk [vmem:[#allocation2 + $0x18] sm:$0xff] %vm246, 0.0
        %251 = vst.msk [vmem:[#allocation2 + $0x20] sm:$0xff] %vm246, 0.0
        %vm252 = vcmask 62464
        %253 = vst.msk [vmem:[#allocation2 + $0x28] sm:$0x3f] %vm252, 0.0
      $region36: #{_forward_impl.2} parent=31 // pred_fallthru
        _
      %v254 = vld [vmem:[%s225] sm:$0xf]
      %v255 = vld [vmem:[%s225 + $0x4] sm:$0xf]
      %v256 = vld [vmem:[%s225 + $0x8] sm:$0xf]
      %v257 = vld [vmem:[%s225 + $0xc] sm:$0xf]
      %v258 = vld [vmem:[%s225 + $0x10] sm:$0xf]
      %v259 = vld [vmem:[%s225 + $0x14] sm:$0xf]
      %v260 = vld [vmem:[%s225 + $0x18] sm:$0xf]
      %v261 = vld [vmem:[%s225 + $0x1c] sm:$0xf]
      %v262 = vld [vmem:[#allocation2] sm:$0xff]
      %v263 = vld [vmem:[#allocation2 + $0x8] sm:$0xff]
      %v264 = vld [vmem:[#allocation2 + $0x10] sm:$0xff]
      %v265 = vld [vmem:[#allocation2 + $0x18] sm:$0xff]
      %v266 = vld [vmem:[#allocation2 + $0x20] sm:$0xff]
      %v267 = vld [vmem:[#allocation2 + $0x28] sm:$0x3f]
      %v268 = vld [vmem:[%s231] sm:$0x3]
      %v275 = vunpack.c.l.b16 %v254
      %v276 = vunpack.c.l.b16 %v255
      %v277 = vunpack.c.l.b16 %v256
      %v278 = vunpack.c.l.b16 %v257
      %v279 = vunpack.c.l.b16 %v258
      %v280 = vunpack.c.l.b16 %v259
      %v281 = vpack.c.b16 %v276, %v275
      %v282 = vpack.c.b16 %v278, %v277
      %v283 = vpack.c.b16 %v280, %v279
      %vm284 = vcmask 31744
      %v286 = vsel %vm284, %v281, 0
      %v289 = vsel %vm284, %v282, 0
      %v292 = vsel %vm284, %v283, 0
      %vm294 = vcmask 1041408
      %v296 = vsel %vm294, %v268, 0
      %298 = vmatpush.bf16.msra.mxu0 0
      %299 = vmatpush.bf16.msra.mxu0 0
      %300 = vmatpush.bf16.msra.mxu0 0
      %301 = vmatpush.bf16.msra.mxu0 0
      %302 = vmatpush.bf16.msra.mxu0 0
      %303 = vmatpush.bf16.msra.mxu0 0
      %304 = vmatpush.bf16.msra.mxu0 0
      %305 = vmatpush.bf16.msra.mxu0 %v296
      %306 = vmatmul.bf16.gmra.mxu0 %v286
      %v307 = vpop.f32.mrf.mxu0
      %v308 = vadd.f32 0.0, %v307
      %v309 = vpop.f32.mrf.mxu0
      %v310 = vadd.f32 0.0, %v309
      %311 = vmatmul.bf16.gmra.mxu0 %v289
      %v312 = vpop.f32.mrf.mxu0
      %v313 = vadd.f32 0.0, %v312
      %v314 = vpop.f32.mrf.mxu0
      %v315 = vadd.f32 0.0, %v314
      %316 = vmatmul.bf16.gmra.mxu0 %v292
      %v317 = vpop.f32.mrf.mxu0
      %v318 = vadd.f32 0.0, %v317
      %v319 = vpop.f32.mrf.mxu0
      %v320 = vadd.f32 0.0, %v319
      %321 = vdwg.mxu0
      %v322 = vadd.f32 %v262, %v308
      %v323 = vadd.f32 %v263, %v310
      %v324 = vadd.f32 %v264, %v313
      %v325 = vadd.f32 %v265, %v315
      %v326 = vadd.f32 %v266, %v318
      %v327 = vadd.f32 %v267, %v320
      %s328 = scalar_lea.vmem %s231, 2
      %v329 = vld [vmem:[%s328] sm:$0x3]
      %vm330 = vsmask.f32 7424
      %v331 = vshrl.u32 %v281, 16
      %v333 = vshll.u32 %v281, 16
      %v335 = vrot.slane %v333, 1
      %v336 = vor.u32 %v331, %v335
      %v337 = vshll.u32 %v282, 16
      %v339 = vrot.slane %v337, 1
      %v340 = vsel %vm330, %v336, %v339
      %v341 = vshrl.u32 %v282, 16
      %v343 = vor.u32 %v341, %v339
      %v344 = vshll.u32 %v283, 16
      %v346 = vrot.slane %v344, 1
      %v347 = vsel %vm330, %v343, %v346
      %v348 = vshrl.u32 %v283, 16
      %v350 = vor.u32 %v348, %v346
      %v352 = vsel %vm284, %v340, 0
      %v355 = vsel %vm284, %v347, 0
      %v358 = vsel %vm284, %v350, 0
      %v361 = vsel %vm294, %v329, 0
      %363 = vmatpush.bf16.msra.mxu0 0
      %364 = vmatpush.bf16.msra.mxu0 0
      %365 = vmatpush.bf16.msra.mxu0 0
      %366 = vmatpush.bf16.msra.mxu0 0
      %367 = vmatpush.bf16.msra.mxu0 0
      %368 = vmatpush.bf16.msra.mxu0 0
      %369 = vmatpush.bf16.msra.mxu0 0
      %370 = vmatpush.bf16.msra.mxu0 %v361
      %371 = vmatmul.bf16.gmra.mxu0 %v352
      %v372 = vpop.f32.mrf.mxu0
      %v373 = vadd.f32 0.0, %v372
      %v374 = vpop.f32.mrf.mxu0
      %v375 = vadd.f32 0.0, %v374
      %376 = vmatmul.bf16.gmra.mxu0 %v355
      %v377 = vpop.f32.mrf.mxu0
      %v378 = vadd.f32 0.0, %v377
      %v379 = vpop.f32.mrf.mxu0
      %v380 = vadd.f32 0.0, %v379
      %381 = vmatmul.bf16.gmra.mxu0 %v358
      %v382 = vpop.f32.mrf.mxu0
      %v383 = vadd.f32 0.0, %v382
      %v384 = vpop.f32.mrf.mxu0
      %v385 = vadd.f32 0.0, %v384
      %386 = vdwg.mxu0
      %v387 = vadd.f32 %v322, %v373
      %v388 = vadd.f32 %v323, %v375
      %v389 = vadd.f32 %v324, %v378
      %v390 = vadd.f32 %v325, %v380
      %v391 = vadd.f32 %v326, %v383
      %v392 = vadd.f32 %v327, %v385
      %s393 = scalar_lea.vmem %s231, 4
      %v394 = vld [vmem:[%s393] sm:$0x3]
      %vm395 = vcmask 1046528
      %v396 = vrot.slane %v281, 1
      %v397 = vrot.slane %v282, 1
      %v398 = vsel %vm395, %v396, %v397
      %v399 = vrot.slane %v283, 1
      %v400 = vsel %vm395, %v397, %v399
      %v402 = vsel %vm284, %v398, 0
      %v405 = vsel %vm284, %v400, 0
      %v408 = vsel %vm284, %v399, 0
      %v411 = vsel %vm294, %v394, 0
      %413 = vmatpush.bf16.msra.mxu0 0
      %414 = vmatpush.bf16.msra.mxu0 0
      %415 = vmatpush.bf16.msra.mxu0 0
      %416 = vmatpush.bf16.msra.mxu0 0
      %417 = vmatpush.bf16.msra.mxu0 0
      %418 = vmatpush.bf16.msra.mxu0 0
      %419 = vmatpush.bf16.msra.mxu0 0
      %420 = vmatpush.bf16.msra.mxu0 %v411
      %421 = vmatmul.bf16.gmra.mxu0 %v402
      %v422 = vpop.f32.mrf.mxu0
      %v423 = vadd.f32 0.0, %v422
      %v424 = vpop.f32.mrf.mxu0
      %v425 = vadd.f32 0.0, %v424
      %426 = vmatmul.bf16.gmra.mxu0 %v405
      %v427 = vpop.f32.mrf.mxu0
      %v428 = vadd.f32 0.0, %v427
      %v429 = vpop.f32.mrf.mxu0
      %v430 = vadd.f32 0.0, %v429
      %431 = vmatmul.bf16.gmra.mxu0 %v408
      %v432 = vpop.f32.mrf.mxu0
      %v433 = vadd.f32 0.0, %v432
      %v434 = vpop.f32.mrf.mxu0
      %v435 = vadd.f32 0.0, %v434
      %436 = vdwg.mxu0
      %v437 = vadd.f32 %v387, %v423
      %v438 = vadd.f32 %v388, %v425
      %v439 = vadd.f32 %v389, %v428
      %v440 = vadd.f32 %v390, %v430
      %v441 = vadd.f32 %v391, %v433
      %v442 = vadd.f32 %v392, %v435
      %s443 = scalar_lea.vmem %s231, 6
      %v444 = vld [vmem:[%s443] sm:$0x3]
      %v446 = vunpack.c.l.b16 %v260
      %v447 = vpack.c.b16 %v277, %v276
      %v448 = vpack.c.b16 %v279, %v278
      %v449 = vpack.c.b16 %v446, %v280
      %v451 = vsel %vm284, %v447, 0
      %v454 = vsel %vm284, %v448, 0
      %v457 = vsel %vm284, %v449, 0
      %v460 = vsel %vm294, %v444, 0
      %462 = vmatpush.bf16.msra.mxu0 0
      %463 = vmatpush.bf16.msra.mxu0 0
      %464 = vmatpush.bf16.msra.mxu0 0
      %465 = vmatpush.bf16.msra.mxu0 0
      %466 = vmatpush.bf16.msra.mxu0 0
      %467 = vmatpush.bf16.msra.mxu0 0
      %468 = vmatpush.bf16.msra.mxu0 0
      %469 = vmatpush.bf16.msra.mxu0 %v460
      %470 = vmatmul.bf16.gmra.mxu0 %v451
      %v471 = vpop.f32.mrf.mxu0
      %v472 = vadd.f32 0.0, %v471
      %v473 = vpop.f32.mrf.mxu0
      %v474 = vadd.f32 0.0, %v473
      %475 = vmatmul.bf16.gmra.mxu0 %v454
      %v476 = vpop.f32.mrf.mxu0
      %v477 = vadd.f32 0.0, %v476
      %v478 = vpop.f32.mrf.mxu0
      %v479 = vadd.f32 0.0, %v478
      %480 = vmatmul.bf16.gmra.mxu0 %v457
      %v481 = vpop.f32.mrf.mxu0
      %v482 = vadd.f32 0.0, %v481
      %v483 = vpop.f32.mrf.mxu0
      %v484 = vadd.f32 0.0, %v483
      %485 = vdwg.mxu0
      %v486 = vadd.f32 %v437, %v472
      %v487 = vadd.f32 %v438, %v474
      %v488 = vadd.f32 %v439, %v477
      %v489 = vadd.f32 %v440, %v479
      %v490 = vadd.f32 %v441, %v482
      %v491 = vadd.f32 %v442, %v484
      %s492 = scalar_lea.vmem %s231, 8
      %v493 = vld [vmem:[%s492] sm:$0x3]
      %v494 = vshrl.u32 %v447, 16
      %v496 = vshll.u32 %v447, 16
      %v498 = vrot.slane %v496, 1
      %v499 = vor.u32 %v494, %v498
      %v500 = vshll.u32 %v448, 16
      %v502 = vrot.slane %v500, 1
      %v503 = vsel %vm330, %v499, %v502
      %v504 = vshrl.u32 %v448, 16
      %v506 = vor.u32 %v504, %v502
      %v507 = vshll.u32 %v449, 16
      %v509 = vrot.slane %v507, 1
      %v510 = vsel %vm330, %v506, %v509
      %v511 = vshrl.u32 %v449, 16
      %v513 = vor.u32 %v511, %v509
      %v515 = vsel %vm284, %v503, 0
      %v518 = vsel %vm284, %v510, 0
      %v521 = vsel %vm284, %v513, 0
      %v524 = vsel %vm294, %v493, 0
      %526 = vmatpush.bf16.msra.mxu0 0
      %527 = vmatpush.bf16.msra.mxu0 0
      %528 = vmatpush.bf16.msra.mxu0 0
      %529 = vmatpush.bf16.msra.mxu0 0
      %530 = vmatpush.bf16.msra.mxu0 0
      %531 = vmatpush.bf16.msra.mxu0 0
      %532 = vmatpush.bf16.msra.mxu0 0
      %533 = vmatpush.bf16.msra.mxu0 %v524
      %534 = vmatmul.bf16.gmra.mxu0 %v515
      %v535 = vpop.f32.mrf.mxu0
      %v536 = vadd.f32 0.0, %v535
      %v537 = vpop.f32.mrf.mxu0
      %v538 = vadd.f32 0.0, %v537
      %539 = vmatmul.bf16.gmra.mxu0 %v518
      %v540 = vpop.f32.mrf.mxu0
      %v541 = vadd.f32 0.0, %v540
      %v542 = vpop.f32.mrf.mxu0
      %v543 = vadd.f32 0.0, %v542
      %544 = vmatmul.bf16.gmra.mxu0 %v521
      %v545 = vpop.f32.mrf.mxu0
      %v546 = vadd.f32 0.0, %v545
      %v547 = vpop.f32.mrf.mxu0
      %v548 = vadd.f32 0.0, %v547
      %549 = vdwg.mxu0
      %v550 = vadd.f32 %v486, %v536
      %v551 = vadd.f32 %v487, %v538
      %v552 = vadd.f32 %v488, %v541
      %v553 = vadd.f32 %v489, %v543
      %v554 = vadd.f32 %v490, %v546
      %v555 = vadd.f32 %v491, %v548
      %s556 = scalar_lea.vmem %s231, 10
      %v557 = vld [vmem:[%s556] sm:$0x3]
      %v558 = vrot.slane %v447, 1
      %v559 = vrot.slane %v448, 1
      %v560 = vsel %vm395, %v558, %v559
      %v561 = vrot.slane %v449, 1
      %v562 = vsel %vm395, %v559, %v561
      %v564 = vsel %vm284, %v560, 0
      %v567 = vsel %vm284, %v562, 0
      %v570 = vsel %vm284, %v561, 0
      %v573 = vsel %vm294, %v557, 0
      %575 = vmatpush.bf16.msra.mxu0 0
      %576 = vmatpush.bf16.msra.mxu0 0
      %577 = vmatpush.bf16.msra.mxu0 0
      %578 = vmatpush.bf16.msra.mxu0 0
      %579 = vmatpush.bf16.msra.mxu0 0
      %580 = vmatpush.bf16.msra.mxu0 0
      %581 = vmatpush.bf16.msra.mxu0 0
      %582 = vmatpush.bf16.msra.mxu0 %v573
      %583 = vmatmul.bf16.gmra.mxu0 %v564
      %v584 = vpop.f32.mrf.mxu0
      %v585 = vadd.f32 0.0, %v584
      %v586 = vpop.f32.mrf.mxu0
      %v587 = vadd.f32 0.0, %v586
      %588 = vmatmul.bf16.gmra.mxu0 %v567
      %v589 = vpop.f32.mrf.mxu0
      %v590 = vadd.f32 0.0, %v589
      %v591 = vpop.f32.mrf.mxu0
      %v592 = vadd.f32 0.0, %v591
      %593 = vmatmul.bf16.gmra.mxu0 %v570
      %v594 = vpop.f32.mrf.mxu0
      %v595 = vadd.f32 0.0, %v594
      %v596 = vpop.f32.mrf.mxu0
      %v597 = vadd.f32 0.0, %v596
      %598 = vdwg.mxu0
      %v599 = vadd.f32 %v550, %v585
      %v600 = vadd.f32 %v551, %v587
      %v601 = vadd.f32 %v552, %v590
      %v602 = vadd.f32 %v553, %v592
      %v603 = vadd.f32 %v554, %v595
      %v604 = vadd.f32 %v555, %v597
      %s605 = scalar_lea.vmem %s231, 12
      %v606 = vld [vmem:[%s605] sm:$0x3]
      %v608 = vunpack.c.l.b16 %v261
      %v609 = vpack.c.b16 %v608, %v446
      %v611 = vsel %vm284, %v609, 0
      %v614 = vsel %vm294, %v606, 0
      %616 = vmatpush.bf16.msra.mxu0 0
      %617 = vmatpush.bf16.msra.mxu0 0
      %618 = vmatpush.bf16.msra.mxu0 0
      %619 = vmatpush.bf16.msra.mxu0 0
      %620 = vmatpush.bf16.msra.mxu0 0
      %621 = vmatpush.bf16.msra.mxu0 0
      %622 = vmatpush.bf16.msra.mxu0 0
      %623 = vmatpush.bf16.msra.mxu0 %v614
      %624 = vmatmul.bf16.gmra.mxu0 %v289
      %v625 = vpop.f32.mrf.mxu0
      %v626 = vadd.f32 0.0, %v625
      %v627 = vpop.f32.mrf.mxu0
      %v628 = vadd.f32 0.0, %v627
      %629 = vmatmul.bf16.gmra.mxu0 %v292
      %v630 = vpop.f32.mrf.mxu0
      %v631 = vadd.f32 0.0, %v630
      %v632 = vpop.f32.mrf.mxu0
      %v633 = vadd.f32 0.0, %v632
      %634 = vmatmul.bf16.gmra.mxu0 %v611
      %v635 = vpop.f32.mrf.mxu0
      %v636 = vadd.f32 0.0, %v635
      %v637 = vpop.f32.mrf.mxu0
      %v638 = vadd.f32 0.0, %v637
      %639 = vdwg.mxu0
      %v640 = vadd.f32 %v599, %v626
      %v641 = vadd.f32 %v600, %v628
      %v642 = vadd.f32 %v601, %v631
      %v643 = vadd.f32 %v602, %v633
      %v644 = vadd.f32 %v603, %v636
      %v645 = vadd.f32 %v604, %v638
      %s646 = scalar_lea.vmem %s231, 14
      %v647 = vld [vmem:[%s646] sm:$0x3]
      %v648 = vshll.u32 %v609, 16
      %v650 = vrot.slane %v648, 1
      %v651 = vsel %vm330, %v350, %v650
      %v652 = vshrl.u32 %v609, 16
      %v654 = vor.u32 %v652, %v650
      %v656 = vsel %vm284, %v651, 0
      %v659 = vsel %vm284, %v654, 0
      %v662 = vsel %vm294, %v647, 0
      %664 = vmatpush.bf16.msra.mxu0 0
      %665 = vmatpush.bf16.msra.mxu0 0
      %666 = vmatpush.bf16.msra.mxu0 0
      %667 = vmatpush.bf16.msra.mxu0 0
      %668 = vmatpush.bf16.msra.mxu0 0
      %669 = vmatpush.bf16.msra.mxu0 0
      %670 = vmatpush.bf16.msra.mxu0 0
      %671 = vmatpush.bf16.msra.mxu0 %v662
      %672 = vmatmul.bf16.gmra.mxu0 %v355
      %v673 = vpop.f32.mrf.mxu0
      %v674 = vadd.f32 0.0, %v673
      %v675 = vpop.f32.mrf.mxu0
      %v676 = vadd.f32 0.0, %v675
      %677 = vmatmul.bf16.gmra.mxu0 %v656
      %v678 = vpop.f32.mrf.mxu0
      %v679 = vadd.f32 0.0, %v678
      %v680 = vpop.f32.mrf.mxu0
      %v681 = vadd.f32 0.0, %v680
      %682 = vmatmul.bf16.gmra.mxu0 %v659
      %v683 = vpop.f32.mrf.mxu0
      %v684 = vadd.f32 0.0, %v683
      %v685 = vpop.f32.mrf.mxu0
      %v686 = vadd.f32 0.0, %v685
      %687 = vdwg.mxu0
      %v688 = vadd.f32 %v640, %v674
      %v689 = vadd.f32 %v641, %v676
      %v690 = vadd.f32 %v642, %v679
      %v691 = vadd.f32 %v643, %v681
      %v692 = vadd.f32 %v644, %v684
      %v693 = vadd.f32 %v645, %v686
      %s694 = scalar_lea.vmem %s231, 16
      %v695 = vld [vmem:[%s694] sm:$0x3]
      %v696 = vrot.slane %v609, 1
      %v697 = vsel %vm395, %v399, %v696
      %v699 = vsel %vm284, %v697, 0
      %v702 = vsel %vm284, %v696, 0
      %v705 = vsel %vm294, %v695, 0
      %707 = vmatpush.bf16.msra.mxu0 0
      %708 = vmatpush.bf16.msra.mxu0 0
      %709 = vmatpush.bf16.msra.mxu0 0
      %710 = vmatpush.bf16.msra.mxu0 0
      %711 = vmatpush.bf16.msra.mxu0 0
      %712 = vmatpush.bf16.msra.mxu0 0
      %713 = vmatpush.bf16.msra.mxu0 0
      %714 = vmatpush.bf16.msra.mxu0 %v705
      %715 = vmatmul.bf16.gmra.mxu0 %v405
      %v716 = vpop.f32.mrf.mxu0
      %v717 = vadd.f32 0.0, %v716
      %v718 = vpop.f32.mrf.mxu0
      %v719 = vadd.f32 0.0, %v718
      %720 = vmatmul.bf16.gmra.mxu0 %v699
      %v721 = vpop.f32.mrf.mxu0
      %v722 = vadd.f32 0.0, %v721
      %v723 = vpop.f32.mrf.mxu0
      %v724 = vadd.f32 0.0, %v723
      %725 = vmatmul.bf16.gmra.mxu0 %v702
      %v726 = vpop.f32.mrf.mxu0
      %v727 = vadd.f32 0.0, %v726
      %v728 = vpop.f32.mrf.mxu0
      %v729 = vadd.f32 0.0, %v728
      %730 = vdwg.mxu0
      %v731 = vadd.f32 %v688, %v717
      %v732 = vadd.f32 %v689, %v719
      %v733 = vadd.f32 %v690, %v722
      %v734 = vadd.f32 %v691, %v724
      %v735 = vadd.f32 %v692, %v727
      %v736 = vadd.f32 %v693, %v729
      %vm737 = vcmask 64512
      %738 = vst.msk [vmem:[#allocation2] sm:$0xff] %vm737, %v731
      %739 = vst.msk [vmem:[#allocation2 + $0x8] sm:$0xff] %vm737, %v732
      %740 = vst.msk [vmem:[#allocation2 + $0x10] sm:$0xff] %vm737, %v733
      %741 = vst.msk [vmem:[#allocation2 + $0x18] sm:$0xff] %vm737, %v734
      %742 = vst.msk [vmem:[#allocation2 + $0x20] sm:$0xff] %vm737, %v735
      %vm743 = vcmask 62464
      %744 = vst.msk [vmem:[#allocation2 + $0x28] sm:$0x3f] %vm743, %v736
      %p745 = scmp.eq.s32.totalorder %s21, 2
      // Predicated region
      $region37: #{_forward_impl.2} parent=31 // pred_check
        %p746 = pneg %p745
      $region38: #{_forward_impl.2} parent=31 // pred_check_branch
        %748 = sbr.rel (%p746) target = $region40
      $region39: #{_forward_impl.2} parent=31 // pred_region
        %v749 = vld [vmem:[#allocation2] sm:$0xff]
        %v750 = vld [vmem:[#allocation2 + $0x8] sm:$0xff]
        %v751 = vld [vmem:[#allocation2 + $0x10] sm:$0xff]
        %v752 = vld [vmem:[#allocation2 + $0x18] sm:$0xff]
        %v753 = vld [vmem:[#allocation2 + $0x20] sm:$0xff]
        %v754 = vld [vmem:[#allocation2 + $0x28] sm:$0x3f]
        %v755 = vld [vmem:[%s2] sm:$0x1]
        %v757 = vperm.slane %v755, 0
        %v759 = vadd.f32 %v749, %v757
        %v760 = vadd.f32 %v750, %v757
        %v761 = vadd.f32 %v751, %v757
        %v762 = vadd.f32 %v752, %v757
        %v763 = vadd.f32 %v753, %v757
        %v764 = vadd.f32 %v754, %v757
        %v765 = vmax.f32 %v759, 0.0
        %v766 = vmax.f32 %v760, 0.0
        %v767 = vmax.f32 %v761, 0.0
        %v768 = vmax.f32 %v762, 0.0
        %v769 = vmax.f32 %v763, 0.0
        %v770 = vmax.f32 %v764, 0.0
        %771 = vst.msk [vmem:[%s240] sm:$0xff] %vm737, %v765
        %772 = vst.msk [vmem:[%s240 + $0x8] sm:$0xff] %vm737, %v766
        %773 = vst.msk [vmem:[%s240 + $0x10] sm:$0xff] %vm737, %v767
        %774 = vst.msk [vmem:[%s240 + $0x18] sm:$0xff] %vm737, %v768
        %775 = vst.msk [vmem:[%s240 + $0x20] sm:$0xff] %vm737, %v769
        %776 = vst.msk [vmem:[%s240 + $0x28] sm:$0x3f] %vm743, %v770
      $region40: #{_forward_impl.2} parent=31 // pred_fallthru
        _
      %p777 = scmp.lt.s32.totalorder %s19, 1
      %s778 = scalar_select %p777, %s19, 1
      %p779 = scmp.lt.s32.totalorder %s20, 5
      %s780 = scalar_select %p779, %s20, 5
      %s781 = smul.addr %s780, 6
      %s782 = smul.addr %s778, 36
      %s783 = sadd.s32 %s781, %s782
      %s784 = smul.addr %s783, 8
      %s785 = scalar_lea.vmem %s3, %s784
      // Predicated region
      $region41: #{_forward_impl.2} parent=31 // pred_check
        %p786 = pneg %p130
      $region42: #{_forward_impl.2} parent=31 // pred_check_branch
        %788 = sbr.rel (%p786) target = $region44
      $region43: #{_forward_impl.2} parent=31 // pred_region
        _
      $region44: #{_forward_impl.2} parent=31 // pred_fallthru
        _
    $region32: #{_forward_impl.2} parent=5 // pred_fallthru
      _
    %p789 = scmp.le.s32.totalorder 2, %s9
    // Predicated region
    $region45: #{_forward_impl.2} parent=5 // pred_check
      %p790 = pneg %p789
    $region46: #{_forward_impl.2} parent=5 // pred_check_branch
      %792 = sbr.rel (%p790) target = $region48
    $region47: #{_forward_impl.2} parent=5 // pred_region
      %s793 = ssub.s32 %s9, 2
      // Predicated region
      $region49: #{_forward_impl.2} parent=47 // pred_check
        %p794 = pneg %p136
      $region50: #{_forward_impl.2} parent=47 // pred_check_branch
        %796 = sbr.rel (%p794) target = $region52
      $region51: #{_forward_impl.2} parent=47 // pred_region
        %p797 = scmp.lt.s32.totalorder %s22, 1
        %s798 = scalar_select %p797, %s22, 1
        %p799 = scmp.lt.s32.totalorder %s23, 5
        %s800 = scalar_select %p799, %s23, 5
        %s801 = smul.addr %s800, 6
        %s802 = smul.addr %s798, 36
        %s803 = sadd.s32 %s801, %s802
        %s804 = smul.addr %s803, 8
        %s805 = scalar_lea.vmem %s3, %s804
      $region52: #{_forward_impl.2} parent=47 // pred_fallthru
        _
    $region48: #{_forward_impl.2} parent=5 // pred_fallthru
      _
  $region6: #{_forward_impl.2} parent=0 // loop_footer
    %s13 = sadd.s32 1, %s9
  $region7: #{_forward_impl.2} parent=0 // loop_footer_branch
    %8 = sbr.rel target = $region3
  $region8: #{_forward_impl.2} parent=0 // loop_exit
    _

// kernel: _forward_impl.3
$region0: #{_forward_impl.3}
  #allocation0 [shape = 'u32[]', space=smem, size = 0x4, offset = 0x4, fixed_abs, tag = 'smem constant byte address 0x4 - core index']
  #allocation1 [shape = 'u32[72,128]{1,0:T(1,128)}', space=vmem, size = 0x9000, scoped, tag = 'internal scratch']
  #allocation2 [shape = 'f32[22,8]{1,0:T(8,128)}', space=vmem, size = 0x3000, scoped, tag = 'scratch operand']
  %s0 = inlined_call_operand.vmem [shape: bf16[2,6,36,8], index: 0, kind: input, shape index: {}]
  %s1 = inlined_call_operand.vmem [shape: bf16[3,9,8,8], index: 1, kind: input, shape index: {}]
  %s2 = inlined_call_operand.vmem [shape: f32[1,8], index: 2, kind: input, shape index: {}]
  %s3 = inlined_call_operand.vmem [shape: f32[2,4,22,8], index: 3, kind: output, shape index: {}]
  %s4 = sld [smem:[#allocation0]]
  $region53: #{_forward_impl.3} parent=0
    _
  %s6 = ssub.s32 1, %s4
  %s7 = scalar_select 0, %s6, %s4
  loop: start=0, step=1, limit=26
  $region2: #{_forward_impl.3} parent=0 // loop_pre_header
    _
  $region3: #{_forward_impl.3} parent=0 // loop_header
    %s9 = sphi 0, %s13
    %p10 = scmp.ge.s32.totalorder %s9, 26
    %s16 = sphi 0, %s35
    %s17 = sphi 0, %s31
    %s18 = sphi 0, %s27
    %s19 = sphi 0, %s16
    %s20 = sphi 0, %s17
    %s21 = sphi 0, %s18
    %s22 = sphi 0, %s19
    %s23 = sphi 0, %s20
    %s24 = sphi 0, %s21
    %s42 = sphi 0, %s44
    %s45 = sphi 0, %s42
    %s46 = sphi 0, %s45
    %s62 = sphi 0, %s46
    %s68 = sphi 0, %s70
    %s71 = sphi 0, %s68
    %s72 = sphi 0, %s71
    %s88 = sphi 0, %s72
    %s92 = sphi 0, %s92
    %s94 = sphi 0, %s92
    %s95 = sphi 0, %s94
    %s109 = sphi 0, %s95
    %s117 = sphi 0, %s119
    %s120 = sphi 0, %s117
    %s121 = sphi 0, %s120
    %s137 = sphi 0, %s121
  $region4: #{_forward_impl.3} parent=0 // loop_header_branch
    %12 = sbr.rel (%p10) target = $region8
  $region5: #{_forward_impl.3} parent=0 // loop_body
    %s14 = ssub.s32 %s9, 1
    %s15 = ssub.s32 %s9, 2
    %s25 = sadd.s32 1, %s18
    %p26 = scmp.ge.s32.totalorder %s25, 3
    %s27 = scalar_select %p26, 0, %s25
    %s28 = sadd.s32 1, %s17
    %s29 = scalar_select %p26, %s28, %s17
    %p30 = scmp.ge.s32.totalorder %s29, 4
    %s31 = scalar_select %p30, 0, %s29
    %s32 = sadd.s32 1, %s16
    %s33 = scalar_select %p30, %s32, %s16
    %p34 = scmp.ge.s32.totalorder %s33, 2
    %s35 = scalar_select %p34, 0, %s33
    %s36 = sadd.s32 %s17, %s18
    %s37 = sadd.s32 %s31, %s27
    %s38 = ssub.s32 %s16, %s35
    %s39 = ssub.s32 %s36, %s37
    %s40 = sor.u32 %s38, %s39
    %p41 = scmp.eq.s32.totalorder %s40, 0
    %s43 = sadd.s32 %s42, 1
    %s44 = scalar_select %p41, %s42, %s43
    %p47 = pneg %p41
    %p48 = scmp.eq.s32.totalorder %s9, 23
    %p49 = por %p47, %p48
    %p50 = scmp.ne.s32.totalorder %s42, %s45
    %p51 = scmp.eq.s32.totalorder %s9, 0
    %p52 = por %p50, %p51
    %p53 = scmp.ne.s32.totalorder %s42, %s45
    %p54 = scmp.eq.s32.totalorder %s14, 23
    %p55 = por %p53, %p54
    %p56 = scmp.ne.s32.totalorder %s45, %s46
    %p57 = scmp.eq.s32.totalorder %s14, 0
    %p58 = por %p56, %p57
    %p59 = scmp.ne.s32.totalorder %s45, %s46
    %p60 = scmp.eq.s32.totalorder %s15, 23
    %p61 = por %p59, %p60
    %p63 = scmp.ne.s32.totalorder %s46, %s62
    %p64 = scmp.eq.s32.totalorder %s15, 0
    %p65 = por %p63, %p64
    %s66 = ssub.s32 %s18, %s27
    %p67 = scmp.eq.s32.totalorder %s66, 0
    %s69 = sadd.s32 %s68, 1
    %s70 = scalar_select %p67, %s68, %s69
    %p73 = pneg %p67
    %p74 = scmp.eq.s32.totalorder %s9, 23
    %p75 = por %p73, %p74
    %p76 = scmp.ne.s32.totalorder %s68, %s71
    %p77 = scmp.eq.s32.totalorder %s9, 0
    %p78 = por %p76, %p77
    %p79 = scmp.ne.s32.totalorder %s68, %s71
    %p80 = scmp.eq.s32.totalorder %s14, 23
    %p81 = por %p79, %p80
    %p82 = scmp.ne.s32.totalorder %s71, %s72
    %p83 = scmp.eq.s32.totalorder %s14, 0
    %p84 = por %p82, %p83
    %p85 = scmp.ne.s32.totalorder %s71, %s72
    %p86 = scmp.eq.s32.totalorder %s15, 23
    %p87 = por %p85, %p86
    %p89 = scmp.ne.s32.totalorder %s72, %s88
    %p90 = scmp.eq.s32.totalorder %s15, 0
    %p91 = por %p89, %p90
    %s93 = sadd.s32 %s92, 1
    %p96 = scmp.eq.s32.totalorder %s9, 23
    %p97 = scmp.ne.s32.totalorder %s92, %s94
    %p98 = scmp.eq.s32.totalorder %s9, 0
    %p99 = por %p97, %p98
    %p100 = scmp.ne.s32.totalorder %s92, %s94
    %p101 = scmp.eq.s32.totalorder %s14, 23
    %p102 = por %p100, %p101
    %p103 = scmp.ne.s32.totalorder %s94, %s95
    %p104 = scmp.eq.s32.totalorder %s14, 0
    %p105 = por %p103, %p104
    %p106 = scmp.ne.s32.totalorder %s94, %s95
    %p107 = scmp.eq.s32.totalorder %s15, 23
    %p108 = por %p106, %p107
    %p110 = scmp.ne.s32.totalorder %s95, %s109
    %p111 = scmp.eq.s32.totalorder %s15, 0
    %p112 = por %p110, %p111
    %s113 = ssub.s32 %s16, %s35
    %s114 = ssub.s32 %s17, %s31
    %s115 = sor.u32 %s113, %s114
    %p116 = scmp.eq.s32.totalorder %s115, 0
    %s118 = sadd.s32 %s117, 1
    %s119 = scalar_select %p116, %s117, %s118
    %p122 = pneg %p116
    %p123 = scmp.eq.s32.totalorder %s9, 23
    %p124 = por %p122, %p123
    %p125 = scmp.ne.s32.totalorder %s117, %s120
    %p126 = scmp.eq.s32.totalorder %s9, 0
    %p127 = por %p125, %p126
    %p128 = scmp.ne.s32.totalorder %s117, %s120
    %p129 = scmp.eq.s32.totalorder %s14, 23
    %p130 = por %p128, %p129
    %p131 = scmp.ne.s32.totalorder %s120, %s121
    %p132 = scmp.eq.s32.totalorder %s14, 0
    %p133 = por %p131, %p132
    %p134 = scmp.ne.s32.totalorder %s120, %s121
    %p135 = scmp.eq.s32.totalorder %s15, 23
    %p136 = por %p134, %p135
    %p138 = scmp.ne.s32.totalorder %s121, %s137
    %p139 = scmp.eq.s32.totalorder %s15, 0
    %p140 = por %p138, %p139
    %p141 = scmp.le.s32.totalorder 1, %s9
    %p142 = scmp.lt.s32.totalorder %s9, 25
    %p143 = pnand %p141, %p142
    %p144 = pneg %p143
    // Predicated region
    $region9: #{_forward_impl.3} parent=5 // pred_check
      _
    $region10: #{_forward_impl.3} parent=5 // pred_check_branch
      %146 = sbr.rel (%p143) target = $region12
    $region11: #{_forward_impl.3} parent=5 // pred_region
      %s147 = ssub.s32 %s9, 1
      // Predicated region
      $region13: #{_forward_impl.3} parent=11 // pred_check
        %p148 = pneg %p105
      $region14: #{_forward_impl.3} parent=11 // pred_check_branch
        %150 = sbr.rel (%p148) target = $region16
      $region15: #{_forward_impl.3} parent=11 // pred_region
        _
      $region16: #{_forward_impl.3} parent=11 // pred_fallthru
        _
    $region12: #{_forward_impl.3} parent=5 // pred_fallthru
      _
    %p151 = scmp.lt.s32.totalorder %s9, 24
    // Predicated region
    $region17: #{_forward_impl.3} parent=5 // pred_check
      %p152 = pneg %p151
    $region18: #{_forward_impl.3} parent=5 // pred_check_branch
      %154 = sbr.rel (%p152) target = $region20
    $region19: #{_forward_impl.3} parent=5 // pred_region
      // Predicated region
      $region21: #{_forward_impl.3} parent=19 // pred_check
        %p155 = pneg %p52
      $region22: #{_forward_impl.3} parent=19 // pred_check_branch
        %157 = sbr.rel (%p155) target = $region24
      $region23: #{_forward_impl.3} parent=19 // pred_region
        %s158 = sadd.s32 %s17, %s18
        %p159 = scmp.lt.s32.totalorder %s16, 1
        %s160 = scalar_select %p159, %s16, 1
        %p161 = scmp.lt.s32.totalorder %s158, 5
        %s162 = scalar_select %p161, %s158, 5
        %s163 = smul.addr %s162, 5
        %s164 = smul.addr %s160, 30
        %s165 = sadd.s32 %s163, %s164
        %s166 = smul.addr %s165, 4
        %s167 = scalar_lea.vmem %s0, %s166
        %s168 = sadd.s32 %s17, %s18
      $region24: #{_forward_impl.3} parent=19 // pred_fallthru
        _
      // Predicated region
      $region25: #{_forward_impl.3} parent=19 // pred_check
        %p169 = pneg %p78
      $region26: #{_forward_impl.3} parent=19 // pred_check_branch
        %171 = sbr.rel (%p169) target = $region28
      $region27: #{_forward_impl.3} parent=19 // pred_region
        %p172 = scmp.lt.s32.totalorder %s18, 2
        %s173 = scalar_select %p172, %s18, 2
        %s174 = smul.addr %s173, 9
        %s175 = smul.addr %s174, 4
        %s176 = scalar_lea.vmem %s1, %s175
      $region28: #{_forward_impl.3} parent=19 // pred_fallthru
        _
    $region20: #{_forward_impl.3} parent=5 // pred_fallthru
      _
    %p177 = scmp.le.s32.totalorder 1, %s9
    %p178 = scmp.lt.s32.totalorder %s9, 25
    %p179 = pnand %p177, %p178
    %p180 = pneg %p179
    // Predicated region
    $region29: #{_forward_impl.3} parent=5 // pred_check
      _
    $region30: #{_forward_impl.3} parent=5 // pred_check_branch
      %182 = sbr.rel (%p179) target = $region32
    $region31: #{_forward_impl.3} parent=5 // pred_region
      %s183 = ssub.s32 %s9, 1
      %s184 = sadd.s32 %s20, %s21
      %p185 = scmp.lt.s32.totalorder %s19, 1
      %s186 = scalar_select %p185, %s19, 1
      %p187 = scmp.lt.s32.totalorder %s184, 5
      %s188 = scalar_select %p187, %s184, 5
      %s189 = smul.addr %s188, 5
      %s190 = smul.addr %s186, 30
      %s191 = sadd.s32 %s189, %s190
      %s192 = smul.addr %s191, 4
      %s193 = scalar_lea.vmem %s0, %s192
      %p194 = pneg %p58
      %p195 = pneg %p55
      %p196 = scmp.lt.s32.totalorder %s21, 2
      %s197 = scalar_select %p196, %s21, 2
      %s198 = smul.addr %s197, 9
      %s199 = smul.addr %s198, 4
      %s200 = scalar_lea.vmem %s1, %s199
      %p201 = pneg %p84
      %p202 = pneg %p81
      %p203 = pneg %p105
      %p204 = pneg %p102
      %p205 = pneg %p133
      %p206 = pneg %p130
      %p207 = scmp.lt.s32.totalorder %s19, 1
      %s208 = scalar_select %p207, %s19, 1
      %p209 = scmp.lt.s32.totalorder %s20, 3
      %s210 = scalar_select %p209, %s20, 3
      %s211 = smul.addr %s210, 3
      %s212 = smul.addr %s208, 12
      %s213 = sadd.s32 %s211, %s212
      %s214 = smul.addr %s213, 8
      %s215 = scalar_lea.vmem %s3, %s214
      %s216 = sadd.s32 %s20, %s21
      %p217 = scmp.lt.s32.totalorder %s19, 1
      %s218 = scalar_select %p217, %s19, 1
      %p219 = scmp.lt.s32.totalorder %s216, 5
      %s220 = scalar_select %p219, %s216, 5
      %s221 = smul.addr %s220, 5
      %s222 = smul.addr %s218, 30
      %s223 = sadd.s32 %s221, %s222
      %s224 = smul.addr %s223, 4
      %s225 = scalar_lea.vmem %s0, %s224
      %s226 = sadd.s32 %s20, %s21
      %p227 = scmp.lt.s32.totalorder %s21, 2
      %s228 = scalar_select %p227, %s21, 2
      %s229 = smul.addr %s228, 9
      %s230 = smul.addr %s229, 4
      %s231 = scalar_lea.vmem %s1, %s230
      %p232 = scmp.lt.s32.totalorder %s19, 1
      %s233 = scalar_select %p232, %s19, 1
      %p234 = scmp.lt.s32.totalorder %s20, 3
      %s235 = scalar_select %p234, %s20, 3
      %s236 = smul.addr %s235, 3
      %s237 = smul.addr %s233, 12
      %s238 = sadd.s32 %s236, %s237
      %s239 = smul.addr %s238, 8
      %s240 = scalar_lea.vmem %s3, %s239
      %p242 = scmp.eq.s32.totalorder %s21, 0
      // Predicated region
      $region33: #{_forward_impl.3} parent=31 // pred_check
        %p243 = pneg %p242
      $region34: #{_forward_impl.3} parent=31 // pred_check_branch
        %245 = sbr.rel (%p243) target = $region36
      $region35: #{_forward_impl.3} parent=31 // pred_region
        %vm246 = vcmask 64512
        %247 = vst.msk [vmem:[#allocation2] sm:$0xff] %vm246, 0.0
        %248 = vst.msk [vmem:[#allocation2 + $0x8] sm:$0xff] %vm246, 0.0
        %vm249 = vcmask 62464
        %250 = vst.msk [vmem:[#allocation2 + $0x10] sm:$0x3f] %vm249, 0.0
      $region36: #{_forward_impl.3} parent=31 // pred_fallthru
        _
      %v251 = vld [vmem:[%s225] sm:$0xf]
      %v252 = vld [vmem:[%s225 + $0x4] sm:$0xf]
      %v253 = vld [vmem:[%s225 + $0x8] sm:$0xf]
      %v254 = vld [vmem:[%s225 + $0xc] sm:$0xf]
      %v255 = vld [vmem:[%s225 + $0x10] sm:$0x3]
      %v256 = vld [vmem:[#allocation2] sm:$0xff]
      %v257 = vld [vmem:[#allocation2 + $0x8] sm:$0xff]
      %v258 = vld [vmem:[#allocation2 + $0x10] sm:$0x3f]
      %v259 = vld [vmem:[%s231] sm:$0xf]
      %v263 = vunpack.c.l.b16 %v251
      %v264 = vunpack.c.l.b16 %v252
      %v265 = vunpack.c.l.b16 %v253
      %v266 = vpack.c.b16 %v264, %v263
      %v267 = vpack.c.b16 %v265, %v265
      %vm268 = vcmask 64512
      %v270 = vsel %vm268, %v266, 0
      %v273 = vsel %vm268, %v267, 0
      %vm275 = vcmask 1043456
      %v277 = vsel %vm275, %v259, 0
      %279 = vmatpush.bf16.msra.mxu0 0
      %280 = vmatpush.bf16.msra.mxu0 0
      %281 = vmatpush.bf16.msra.mxu0 0
      %282 = vmatpush.bf16.msra.mxu0 0
      %283 = vmatpush.bf16.msra.mxu0 0
      %284 = vmatpush.bf16.msra.mxu0 0
      %285 = vmatpush.bf16.msra.mxu0 0
      %286 = vmatpush.bf16.msra.mxu0 %v277
      %287 = vmatmul.bf16.gmra.mxu0 %v270
      %v288 = vpop.f32.mrf.mxu0
      %v289 = vadd.f32 0.0, %v288
      %v290 = vpop.f32.mrf.mxu0
      %v291 = vadd.f32 0.0, %v290
      %292 = vmatmul.bf16.gmra.mxu0 %v273
      %v293 = vpop.f32.mrf.mxu0
      %v294 = vadd.f32 0.0, %v293
      %v295 = vpop.f32.mrf.mxu0
      %296 = vdwg.mxu0
      %v297 = vadd.f32 %v256, %v289
      %v298 = vadd.f32 %v257, %v291
      %v299 = vadd.f32 %v258, %v294
      %s300 = scalar_lea.vmem %s231, 4
      %v301 = vld [vmem:[%s300] sm:$0xf]
      %vm302 = vsmask.f32 7424
      %v303 = vshrl.u32 %v266, 16
      %v305 = vshll.u32 %v266, 16
      %v307 = vrot.slane %v305, 1
      %v308 = vor.u32 %v303, %v307
      %v309 = vshll.u32 %v267, 16
      %v311 = vrot.slane %v309, 1
      %v312 = vsel %vm302, %v308, %v311
      %v313 = vshrl.u32 %v267, 16
      %v315 = vor.u32 %v313, %v311
      %v317 = vsel %vm268, %v312, 0
      %v320 = vsel %vm268, %v315, 0
      %v323 = vsel %vm275, %v301, 0
      %325 = vmatpush.bf16.msra.mxu0 0
      %326 = vmatpush.bf16.msra.mxu0 0
      %327 = vmatpush.bf16.msra.mxu0 0
      %328 = vmatpush.bf16.msra.mxu0 0
      %329 = vmatpush.bf16.msra.mxu0 0
      %330 = vmatpush.bf16.msra.mxu0 0
      %331 = vmatpush.bf16.msra.mxu0 0
      %332 = vmatpush.bf16.msra.mxu0 %v323
      %333 = vmatmul.bf16.gmra.mxu0 %v317
      %v334 = vpop.f32.mrf.mxu0
      %v335 = vadd.f32 0.0, %v334
      %v336 = vpop.f32.mrf.mxu0
      %v337 = vadd.f32 0.0, %v336
      %338 = vmatmul.bf16.gmra.mxu0 %v320
      %v339 = vpop.f32.mrf.mxu0
      %v340 = vadd.f32 0.0, %v339
      %v341 = vpop.f32.mrf.mxu0
      %342 = vdwg.mxu0
      %v343 = vadd.f32 %v297, %v335
      %v344 = vadd.f32 %v298, %v337
      %v345 = vadd.f32 %v299, %v340
      %s346 = scalar_lea.vmem %s231, 8
      %v347 = vld [vmem:[%s346] sm:$0xf]
      %vm348 = vcmask 1046528
      %v349 = vrot.slane %v266, 1
      %v350 = vrot.slane %v267, 1
      %v351 = vsel %vm348, %v349, %v350
      %v353 = vsel %vm268, %v351, 0
      %v356 = vsel %vm268, %v350, 0
      %v359 = vsel %vm275, %v347, 0
      %361 = vmatpush.bf16.msra.mxu0 0
      %362 = vmatpush.bf16.msra.mxu0 0
      %363 = vmatpush.bf16.msra.mxu0 0
      %364 = vmatpush.bf16.msra.mxu0 0
      %365 = vmatpush.bf16.msra.mxu0 0
      %366 = vmatpush.bf16.msra.mxu0 0
      %367 = vmatpush.bf16.msra.mxu0 0
      %368 = vmatpush.bf16.msra.mxu0 %v359
      %369 = vmatmul.bf16.gmra.mxu0 %v353
      %v370 = vpop.f32.mrf.mxu0
      %v371 = vadd.f32 0.0, %v370
      %v372 = vpop.f32.mrf.mxu0
      %v373 = vadd.f32 0.0, %v372
      %374 = vmatmul.bf16.gmra.mxu0 %v356
      %v375 = vpop.f32.mrf.mxu0
      %v376 = vadd.f32 0.0, %v375
      %v377 = vpop.f32.mrf.mxu0
      %378 = vdwg.mxu0
      %v379 = vadd.f32 %v343, %v371
      %v380 = vadd.f32 %v344, %v373
      %v381 = vadd.f32 %v345, %v376
      %s382 = scalar_lea.vmem %s231, 12
      %v383 = vld [vmem:[%s382] sm:$0xf]
      %v385 = vunpack.c.l.b16 %v254
      %v386 = vpack.c.b16 %v385, %v265
      %vm387 = vcmask 1044480
      %v388 = vrot.slane %v266, 3
      %v389 = vrot.slane %v386, 3
      %v390 = vsel %vm387, %v388, %v389
      %v392 = vsel %vm268, %v390, 0
      %v395 = vsel %vm268, %v389, 0
      %v398 = vsel %vm275, %v383, 0
      %400 = vmatpush.bf16.msra.mxu0 0
      %401 = vmatpush.bf16.msra.mxu0 0
      %402 = vmatpush.bf16.msra.mxu0 0
      %403 = vmatpush.bf16.msra.mxu0 0
      %404 = vmatpush.bf16.msra.mxu0 0
      %405 = vmatpush.bf16.msra.mxu0 0
      %406 = vmatpush.bf16.msra.mxu0 0
      %407 = vmatpush.bf16.msra.mxu0 %v398
      %408 = vmatmul.bf16.gmra.mxu0 %v392
      %v409 = vpop.f32.mrf.mxu0
      %v410 = vadd.f32 0.0, %v409
      %v411 = vpop.f32.mrf.mxu0
      %v412 = vadd.f32 0.0, %v411
      %413 = vmatmul.bf16.gmra.mxu0 %v395
      %v414 = vpop.f32.mrf.mxu0
      %v415 = vadd.f32 0.0, %v414
      %v416 = vpop.f32.mrf.mxu0
      %417 = vdwg.mxu0
      %v418 = vadd.f32 %v379, %v410
      %v419 = vadd.f32 %v380, %v412
      %v420 = vadd.f32 %v381, %v415
      %s421 = scalar_lea.vmem %s231, 16
      %v422 = vld [vmem:[%s421] sm:$0xf]
      %vm423 = vsmask.f32 4352
      %v424 = vrot.slane %v303, 3
      %v425 = vrot.slane %v305, 4
      %v426 = vor.u32 %v424, %v425
      %v428 = vshrl.u32 %v386, 16
      %v430 = vrot.slane %v428, 3
      %v431 = vshll.u32 %v386, 16
      %v433 = vrot.slane %v431, 4
      %v434 = vor.u32 %v430, %v433
      %v435 = vsel %vm423, %v426, %v434
      %v437 = vsel %vm268, %v435, 0
      %v440 = vsel %vm268, %v434, 0
      %v443 = vsel %vm275, %v422, 0
      %445 = vmatpush.bf16.msra.mxu0 0
      %446 = vmatpush.bf16.msra.mxu0 0
      %447 = vmatpush.bf16.msra.mxu0 0
      %448 = vmatpush.bf16.msra.mxu0 0
      %449 = vmatpush.bf16.msra.mxu0 0
      %450 = vmatpush.bf16.msra.mxu0 0
      %451 = vmatpush.bf16.msra.mxu0 0
      %452 = vmatpush.bf16.msra.mxu0 %v443
      %453 = vmatmul.bf16.gmra.mxu0 %v437
      %v454 = vpop.f32.mrf.mxu0
      %v455 = vadd.f32 0.0, %v454
      %v456 = vpop.f32.mrf.mxu0
      %v457 = vadd.f32 0.0, %v456
      %458 = vmatmul.bf16.gmra.mxu0 %v440
      %v459 = vpop.f32.mrf.mxu0
      %v460 = vadd.f32 0.0, %v459
      %v461 = vpop.f32.mrf.mxu0
      %462 = vdwg.mxu0
      %v463 = vadd.f32 %v418, %v455
      %v464 = vadd.f32 %v419, %v457
      %v465 = vadd.f32 %v420, %v460
      %s466 = scalar_lea.vmem %s231, 20
      %v467 = vld [vmem:[%s466] sm:$0xf]
      %v468 = vpack.c.b16 %v265, %v264
      %v469 = vpack.c.b16 %v385, %v385
      %v471 = vsel %vm268, %v468, 0
      %v474 = vsel %vm268, %v469, 0
      %v477 = vsel %vm275, %v467, 0
      %479 = vmatpush.bf16.msra.mxu0 0
      %480 = vmatpush.bf16.msra.mxu0 0
      %481 = vmatpush.bf16.msra.mxu0 0
      %482 = vmatpush.bf16.msra.mxu0 0
      %483 = vmatpush.bf16.msra.mxu0 0
      %484 = vmatpush.bf16.msra.mxu0 0
      %485 = vmatpush.bf16.msra.mxu0 0
      %486 = vmatpush.bf16.msra.mxu0 %v477
      %487 = vmatmul.bf16.gmra.mxu0 %v471
      %v488 = vpop.f32.mrf.mxu0
      %v489 = vadd.f32 0.0, %v488
      %v490 = vpop.f32.mrf.mxu0
      %v491 = vadd.f32 0.0, %v490
      %492 = vmatmul.bf16.gmra.mxu0 %v474
      %v493 = vpop.f32.mrf.mxu0
      %v494 = vadd.f32 0.0, %v493
      %v495 = vpop.f32.mrf.mxu0
      %496 = vdwg.mxu0
      %v497 = vadd.f32 %v463, %v489
      %v498 = vadd.f32 %v464, %v491
      %v499 = vadd.f32 %v465, %v494
      %s500 = scalar_lea.vmem %s231, 24
      %v501 = vld [vmem:[%s500] sm:$0xf]
      %v503 = vunpack.c.l.b16 %v255
      %v504 = vpack.c.b16 %v503, %v385
      %vm505 = vcmask 1045504
      %v506 = vrot.slane %v468, 2
      %v507 = vrot.slane %v504, 2
      %v508 = vsel %vm505, %v506, %v507
      %v510 = vsel %vm268, %v508, 0
      %v513 = vsel %vm268, %v507, 0
      %v516 = vsel %vm275, %v501, 0
      %518 = vmatpush.bf16.msra.mxu0 0
      %519 = vmatpush.bf16.msra.mxu0 0
      %520 = vmatpush.bf16.msra.mxu0 0
      %521 = vmatpush.bf16.msra.mxu0 0
      %522 = vmatpush.bf16.msra.mxu0 0
      %523 = vmatpush.bf16.msra.mxu0 0
      %524 = vmatpush.bf16.msra.mxu0 0
      %525 = vmatpush.bf16.msra.mxu0 %v516
      %526 = vmatmul.bf16.gmra.mxu0 %v510
      %v527 = vpop.f32.mrf.mxu0
      %v528 = vadd.f32 0.0, %v527
      %v529 = vpop.f32.mrf.mxu0
      %v530 = vadd.f32 0.0, %v529
      %531 = vmatmul.bf16.gmra.mxu0 %v513
      %v532 = vpop.f32.mrf.mxu0
      %v533 = vadd.f32 0.0, %v532
      %v534 = vpop.f32.mrf.mxu0
      %535 = vdwg.mxu0
      %v536 = vadd.f32 %v497, %v528
      %v537 = vadd.f32 %v498, %v530
      %v538 = vadd.f32 %v499, %v533
      %s539 = scalar_lea.vmem %s231, 28
      %v540 = vld [vmem:[%s539] sm:$0xf]
      %vm541 = vsmask.f32 5376
      %v542 = vshrl.u32 %v468, 16
      %v544 = vrot.slane %v542, 2
      %v545 = vshll.u32 %v468, 16
      %v547 = vrot.slane %v545, 3
      %v548 = vor.u32 %v544, %v547
      %v550 = vshrl.u32 %v504, 16
      %v552 = vrot.slane %v550, 2
      %v553 = vshll.u32 %v504, 16
      %v555 = vrot.slane %v553, 3
      %v556 = vor.u32 %v552, %v555
      %v557 = vsel %vm541, %v548, %v556
      %v559 = vsel %vm268, %v557, 0
      %v562 = vsel %vm268, %v556, 0
      %v565 = vsel %vm275, %v540, 0
      %567 = vmatpush.bf16.msra.mxu0 0
      %568 = vmatpush.bf16.msra.mxu0 0
      %569 = vmatpush.bf16.msra.mxu0 0
      %570 = vmatpush.bf16.msra.mxu0 0
      %571 = vmatpush.bf16.msra.mxu0 0
      %572 = vmatpush.bf16.msra.mxu0 0
      %573 = vmatpush.bf16.msra.mxu0 0
      %574 = vmatpush.bf16.msra.mxu0 %v565
      %575 = vmatmul.bf16.gmra.mxu0 %v559
      %v576 = vpop.f32.mrf.mxu0
      %v577 = vadd.f32 0.0, %v576
      %v578 = vpop.f32.mrf.mxu0
      %v579 = vadd.f32 0.0, %v578
      %580 = vmatmul.bf16.gmra.mxu0 %v562
      %v581 = vpop.f32.mrf.mxu0
      %v582 = vadd.f32 0.0, %v581
      %v583 = vpop.f32.mrf.mxu0
      %584 = vdwg.mxu0
      %v585 = vadd.f32 %v536, %v577
      %v586 = vadd.f32 %v537, %v579
      %v587 = vadd.f32 %v538, %v582
      %s588 = scalar_lea.vmem %s231, 32
      %v589 = vld [vmem:[%s588] sm:$0xf]
      %v590 = vrot.slane %v468, 3
      %v591 = vrot.slane %v504, 3
      %v592 = vsel %vm387, %v590, %v591
      %v594 = vsel %vm268, %v592, 0
      %v597 = vsel %vm268, %v591, 0
      %v600 = vsel %vm275, %v589, 0
      %602 = vmatpush.bf16.msra.mxu0 0
      %603 = vmatpush.bf16.msra.mxu0 0
      %604 = vmatpush.bf16.msra.mxu0 0
      %605 = vmatpush.bf16.msra.mxu0 0
      %606 = vmatpush.bf16.msra.mxu0 0
      %607 = vmatpush.bf16.msra.mxu0 0
      %608 = vmatpush.bf16.msra.mxu0 0
      %609 = vmatpush.bf16.msra.mxu0 %v600
      %610 = vmatmul.bf16.gmra.mxu0 %v594
      %v611 = vpop.f32.mrf.mxu0
      %v612 = vadd.f32 0.0, %v611
      %v613 = vpop.f32.mrf.mxu0
      %v614 = vadd.f32 0.0, %v613
      %615 = vmatmul.bf16.gmra.mxu0 %v597
      %v616 = vpop.f32.mrf.mxu0
      %v617 = vadd.f32 0.0, %v616
      %v618 = vpop.f32.mrf.mxu0
      %619 = vdwg.mxu0
      %v620 = vadd.f32 %v585, %v612
      %v621 = vadd.f32 %v586, %v614
      %v622 = vadd.f32 %v587, %v617
      %623 = vst.msk [vmem:[#allocation2] sm:$0xff] %vm268, %v620
      %624 = vst.msk [vmem:[#allocation2 + $0x8] sm:$0xff] %vm268, %v621
      %vm625 = vcmask 62464
      %626 = vst.msk [vmem:[#allocation2 + $0x10] sm:$0x3f] %vm625, %v622
      %p627 = scmp.eq.s32.totalorder %s21, 2
      // Predicated region
      $region37: #{_forward_impl.3} parent=31 // pred_check
        %p628 = pneg %p627
      $region38: #{_forward_impl.3} parent=31 // pred_check_branch
        %630 = sbr.rel (%p628) target = $region40
      $region39: #{_forward_impl.3} parent=31 // pred_region
        %v631 = vld [vmem:[#allocation2] sm:$0xff]
        %v632 = vld [vmem:[#allocation2 + $0x8] sm:$0xff]
        %v633 = vld [vmem:[#allocation2 + $0x10] sm:$0x3f]
        %v634 = vld [vmem:[%s2] sm:$0x1]
        %v636 = vperm.slane %v634, 0
        %v638 = vadd.f32 %v631, %v636
        %v639 = vadd.f32 %v632, %v636
        %v640 = vadd.f32 %v633, %v636
        %v641 = vmax.f32 %v638, 0.0
        %v642 = vmax.f32 %v639, 0.0
        %v643 = vmax.f32 %v640, 0.0
        %644 = vst.msk [vmem:[%s240] sm:$0xff] %vm268, %v641
        %645 = vst.msk [vmem:[%s240 + $0x8] sm:$0xff] %vm268, %v642
        %646 = vst.msk [vmem:[%s240 + $0x10] sm:$0x3f] %vm625, %v643
      $region40: #{_forward_impl.3} parent=31 // pred_fallthru
        _
      %p647 = scmp.lt.s32.totalorder %s19, 1
      %s648 = scalar_select %p647, %s19, 1
      %p649 = scmp.lt.s32.totalorder %s20, 3
      %s650 = scalar_select %p649, %s20, 3
      %s651 = smul.addr %s650, 3
      %s652 = smul.addr %s648, 12
      %s653 = sadd.s32 %s651, %s652
      %s654 = smul.addr %s653, 8
      %s655 = scalar_lea.vmem %s3, %s654
      // Predicated region
      $region41: #{_forward_impl.3} parent=31 // pred_check
        %p656 = pneg %p130
      $region42: #{_forward_impl.3} parent=31 // pred_check_branch
        %658 = sbr.rel (%p656) target = $region44
      $region43: #{_forward_impl.3} parent=31 // pred_region
        _
      $region44: #{_forward_impl.3} parent=31 // pred_fallthru
        _
    $region32: #{_forward_impl.3} parent=5 // pred_fallthru
      _
    %p659 = scmp.le.s32.totalorder 2, %s9
    // Predicated region
    $region45: #{_forward_impl.3} parent=5 // pred_check
      %p660 = pneg %p659
    $region46: #{_forward_impl.3} parent=5 // pred_check_branch
      %662 = sbr.rel (%p660) target = $region48
    $region47: #{_forward_impl.3} parent=5 // pred_region
      %s663 = ssub.s32 %s9, 2
      // Predicated region
      $region49: #{_forward_impl.3} parent=47 // pred_check
        %p664 = pneg %p136
      $region50: #{_forward_impl.3} parent=47 // pred_check_branch
        %666 = sbr.rel (%p664) target = $region52
      $region51: #{_forward_impl.3} parent=47 // pred_region
        %p667 = scmp.lt.s32.totalorder %s22, 1
        %s668 = scalar_select %p667, %s22, 1
        %p669 = scmp.lt.s32.totalorder %s23, 3
        %s670 = scalar_select %p669, %s23, 3
        %s671 = smul.addr %s670, 3
        %s672 = smul.addr %s668, 12
        %s673 = sadd.s32 %s671, %s672
        %s674 = smul.addr %s673, 8
        %s675 = scalar_lea.vmem %s3, %s674
      $region52: #{_forward_impl.3} parent=47 // pred_fallthru
        _
    $region48: #{_forward_impl.3} parent=5 // pred_fallthru
      _
  $region6: #{_forward_impl.3} parent=0 // loop_footer
    %s13 = sadd.s32 1, %s9
  $region7: #{_forward_impl.3} parent=0 // loop_footer_branch
    %8 = sbr.rel target = $region3
  $region8: #{_forward_impl.3} parent=0 // loop_exit
    _

</llo_original>
